<compile_context>
chip_gen: v6e
topology: v6e:2x2x1
jax: 0.10.0
libtpu: 0.0.40
codegen_flags: <defaults>
</compile_context>

<pallas_src>
import jax
import jax.numpy as jnp
from jax.experimental import pallas as pl
from jax.experimental.pallas import tpu as pltpu

# ---- model hyper-parameters -------------------------------------------------
BATCH = 256            # raised from 8 (perf feedback): amortize overhead, fill MXU
INPUT_DIM = 32
PAD_INPUT_DIM = 128    # input features zero-padded to a full lane tile
LATENT_DIM = 128
CELLS_PER_BLOCK = 2
LAYERS_PER_CELL = 2
N_LAYERS = CELLS_PER_BLOCK * LAYERS_PER_CELL
BN_EPS = 1e-5


def resnet_kernel(x_ref, w_in_ref, b_in_ref,
                  gamma_ref, beta_ref, w_ref, b_ref, o_ref):
    """Whole ResNet forward in one invocation (everything VMEM-resident).

    x_ref   : [BATCH, PAD_INPUT_DIM]  bf16 (zero-padded input)
    w_in_ref: [PAD_INPUT_DIM, LATENT] bf16
    b_in_ref: [1, LATENT]             f32
    gamma/beta_ref: [N_LAYERS, LATENT] f32
    w_ref   : [N_LAYERS, LATENT, LATENT] bf16
    b_ref   : [N_LAYERS, LATENT]      f32
    o_ref   : [BATCH, LATENT]         f32
    """
    inv_b = jnp.float32(1.0 / BATCH)

    # Input Linear: bf16 operands on the MXU, f32 accumulation.
    x = jnp.dot(x_ref[...], w_in_ref[...],
                preferred_element_type=jnp.float32) + b_in_ref[...]

    layer = 0
    for _cell in range(CELLS_PER_BLOCK):
        h = x
        for _l in range(LAYERS_PER_CELL):
            # BatchNorm1d (training mode: batch mean, biased variance).
            # var = E[h^2] - E[h]^2 -> two independent XLU reductions.
            m1 = jnp.sum(h, axis=0, keepdims=True) * inv_b          # [1, D]
            m2 = jnp.sum(h * h, axis=0, keepdims=True) * inv_b      # [1, D]
            var = m2 - m1 * m1
            scale = jax.lax.rsqrt(var + BN_EPS) * gamma_ref[layer:layer + 1, :]
            h = (h - m1) * scale + beta_ref[layer:layer + 1, :]
            # ReLU
            h = jnp.maximum(h, 0.0)
            # Linear(latent_dim, latent_dim): bf16 in, f32 accumulate.
            h = jnp.dot(h.astype(jnp.bfloat16), w_ref[layer],
                        preferred_element_type=jnp.float32) + b_ref[layer:layer + 1, :]
            layer += 1
        # residual averaging
        x = (x + h) * 0.5

    o_ref[...] = x


@jax.jit
def resnet_forward(x, w_in, b_in, gammas, betas, ws, bs):
    # One-time prep per call (tiny XLA ops): zero-pad input features to a full
    # 128-lane tile and cast MXU operands to bf16.
    x_pad = jnp.zeros((BATCH, PAD_INPUT_DIM), jnp.float32).at[:, :INPUT_DIM].set(x)
    w_in_pad = (jnp.zeros((PAD_INPUT_DIM, LATENT_DIM), jnp.float32)
                .at[:INPUT_DIM, :].set(w_in))
    x_bf = x_pad.astype(jnp.bfloat16)
    w_in_bf = w_in_pad.astype(jnp.bfloat16)
    ws_bf = ws.astype(jnp.bfloat16)

    vmem = pl.BlockSpec(memory_space=pltpu.MemorySpace.VMEM)
    return pl.pallas_call(
        resnet_kernel,
        out_shape=jax.ShapeDtypeStruct((BATCH, LATENT_DIM), jnp.float32),
        in_specs=[vmem] * 7,
        out_specs=vmem,
    )(x_bf, w_in_bf, b_in, gammas, betas, ws_bf, bs)


# ---- references --------------------------------------------------------------
def reference_forward_f32(x, w_in, b_in, gammas, betas, ws, bs):
    """Pure-f32 JAX reference mirroring the PyTorch forward (training-mode BN)."""
    x = x @ w_in + b_in
    layer = 0
    for _ in range(CELLS_PER_BLOCK):
        h = x
        for _ in range(LAYERS_PER_CELL):
            mean = jnp.mean(h, axis=0, keepdims=True)
            var = jnp.mean((h - mean) ** 2, axis=0, keepdims=True)
            h = (h - mean) / jnp.sqrt(var + BN_EPS) * gammas[layer] + betas[layer]
            h = jnp.maximum(h, 0.0)
            h = h @ ws[layer] + bs[layer]
            layer += 1
        x = (x + h) / 2
    return x


def reference_forward_mirror(x, w_in, b_in, gammas, betas, ws, bs):
    """Reference mirroring the kernel's bf16 matmuls / BN formulation (tight check)."""
    inv_b = jnp.float32(1.0 / BATCH)
    x = jnp.dot(x.astype(jnp.bfloat16), w_in.astype(jnp.bfloat16),
                preferred_element_type=jnp.float32) + b_in
    layer = 0
    for _ in range(CELLS_PER_BLOCK):
        h = x
        for _ in range(LAYERS_PER_CELL):
            m1 = jnp.sum(h, axis=0, keepdims=True) * inv_b
            m2 = jnp.sum(h * h, axis=0, keepdims=True) * inv_b
            var = m2 - m1 * m1
            scale = jax.lax.rsqrt(var + BN_EPS) * gammas[layer]
            h = (h - m1) * scale + betas[layer]
            h = jnp.maximum(h, 0.0)
            h = jnp.dot(h.astype(jnp.bfloat16), ws[layer].astype(jnp.bfloat16),
                        preferred_element_type=jnp.float32) + bs[layer]
            layer += 1
        x = (x + h) * 0.5
    return x


def init_params(key):
    """Deterministic synthetic parameters (shapes follow nn.Module.__init__)."""
    keys = jax.random.split(key, 2 + 2 * N_LAYERS)
    # input Linear: torch weight is [latent, input]; stored pre-transposed [input, latent]
    w_in = (jax.random.normal(keys[0], (INPUT_DIM, LATENT_DIM), jnp.float32)
            * (1.0 / jnp.sqrt(INPUT_DIM)))
    b_in = jax.random.normal(keys[1], (1, LATENT_DIM), jnp.float32) * 0.01

    ws, bs = [], []
    for i in range(N_LAYERS):
        w = (jax.random.normal(keys[2 + 2 * i], (LATENT_DIM, LATENT_DIM), jnp.float32)
             * (1.0 / jnp.sqrt(LATENT_DIM)))
        b = jax.random.normal(keys[3 + 2 * i], (LATENT_DIM,), jnp.float32) * 0.01
        ws.append(w)
        bs.append(b)
    ws = jnp.stack(ws)                                   # [N_LAYERS, D, D]
    bs = jnp.stack(bs)                                   # [N_LAYERS, D]
    # BatchNorm affine params: torch default gamma=1, beta=0
    gammas = jnp.ones((N_LAYERS, LATENT_DIM), jnp.float32)
    betas = jnp.zeros((N_LAYERS, LATENT_DIM), jnp.float32)
    return w_in, b_in, gammas, betas, ws, bs


if __name__ == "__main__":
    key = jax.random.PRNGKey(0)
    k_x, k_p = jax.random.split(key)
    x = jax.random.normal(k_x, (BATCH, INPUT_DIM), jnp.float32)
    params = init_params(k_p)

    out = jax.block_until_ready(resnet_forward(x, *params))
    assert out.shape == (BATCH, LATENT_DIM)
    assert bool(jnp.all(jnp.isfinite(out)))

    # Tight numerical check vs a reference that mirrors the kernel's bf16/BN math.
    ref_mirror = reference_forward_mirror(x, *params)
    assert jnp.allclose(out, ref_mirror, atol=5e-3, rtol=5e-3), "mismatch vs mirror ref"

    # Semantic check vs the pure-f32 PyTorch-equivalent forward
    # (tolerance loosened because the kernel feeds the MXU bf16 operands).
    ref_f32 = reference_forward_f32(x, *params)
    assert jnp.allclose(out, ref_f32, atol=5e-2, rtol=5e-2), "mismatch vs f32 ref"

    print("KERNEL_OK")
</pallas_src>

<mosaic_0001>
module attributes {stable_mosaic.version = 11 : i64} {
  func.func @resnet_kernel(%arg0: memref<256x128xbf16, #tpu.memory_space<vmem>>, %arg1: memref<128x128xbf16, #tpu.memory_space<vmem>>, %arg2: memref<1x128xf32, #tpu.memory_space<vmem>>, %arg3: memref<4x128xf32, #tpu.memory_space<vmem>>, %arg4: memref<4x128xf32, #tpu.memory_space<vmem>>, %arg5: memref<4x128x128xbf16, #tpu.memory_space<vmem>>, %arg6: memref<4x128xf32, #tpu.memory_space<vmem>>, %arg7: memref<256x128xf32, #tpu.memory_space<vmem>>) attributes {dimension_semantics = [], scalar_prefetch = 0 : i64, scratch_operands = 0 : i64, tpu.core_type = #tpu.core_type<tc>} {
    %c0 = arith.constant 0 : index
    %c0_0 = arith.constant 0 : index
    %0 = vector.load %arg0[%c0, %c0_0] : memref<256x128xbf16, #tpu.memory_space<vmem>>, vector<256x128xbf16>
    %c0_1 = arith.constant 0 : index
    %c0_2 = arith.constant 0 : index
    %1 = vector.load %arg1[%c0_1, %c0_2] : memref<128x128xbf16, #tpu.memory_space<vmem>>, vector<128x128xbf16>
    %cst = arith.constant dense<0.000000e+00> : vector<256x128xf32>
    %2 = tpu.matmul %0, %1, %cst {dimension_numbers = #tpu.dot_dimension_numbers<[1], [0], [0], [1], [0, 0, 1, 1], [], []>} : vector<256x128xbf16>, vector<128x128xbf16>, vector<256x128xf32> -> vector<256x128xf32>
    %c0_3 = arith.constant 0 : index
    %c0_4 = arith.constant 0 : index
    %3 = vector.load %arg2[%c0_3, %c0_4] : memref<1x128xf32, #tpu.memory_space<vmem>>, vector<1x128xf32>
    %4 = vector.broadcast %3 : vector<1x128xf32> to vector<256x128xf32>
    %5 = arith.addf %2, %4 : vector<256x128xf32>
    %cst_5 = arith.constant dense<0.000000e+00> : vector<128xf32>
    %6 = vector.multi_reduction <add>, %5, %cst_5 [0] : vector<256x128xf32> to vector<128xf32>
    %7 = vector.shape_cast %6 : vector<128xf32> to vector<1x128xf32>
    %cst_6 = arith.constant 3.906250e-03 : f32
    %8 = vector.broadcast %cst_6 : f32 to vector<1x128xf32>
    %9 = arith.mulf %7, %8 : vector<1x128xf32>
    %10 = arith.mulf %5, %5 : vector<256x128xf32>
    %cst_7 = arith.constant dense<0.000000e+00> : vector<128xf32>
    %11 = vector.multi_reduction <add>, %10, %cst_7 [0] : vector<256x128xf32> to vector<128xf32>
    %12 = vector.shape_cast %11 : vector<128xf32> to vector<1x128xf32>
    %cst_8 = arith.constant 3.906250e-03 : f32
    %13 = vector.broadcast %cst_8 : f32 to vector<1x128xf32>
    %14 = arith.mulf %12, %13 : vector<1x128xf32>
    %15 = arith.mulf %9, %9 : vector<1x128xf32>
    %16 = arith.subf %14, %15 : vector<1x128xf32>
    %cst_9 = arith.constant 9.99999974E-6 : f32
    %17 = vector.broadcast %cst_9 : f32 to vector<1x128xf32>
    %18 = arith.addf %16, %17 : vector<1x128xf32>
    %19 = math.rsqrt %18 : vector<1x128xf32>
    %c0_10 = arith.constant 0 : index
    %c0_11 = arith.constant 0 : index
    %20 = vector.load %arg3[%c0_10, %c0_11] : memref<4x128xf32, #tpu.memory_space<vmem>>, vector<1x128xf32>
    %21 = arith.mulf %19, %20 : vector<1x128xf32>
    %22 = vector.broadcast %9 : vector<1x128xf32> to vector<256x128xf32>
    %23 = arith.subf %5, %22 : vector<256x128xf32>
    %24 = vector.broadcast %21 : vector<1x128xf32> to vector<256x128xf32>
    %25 = arith.mulf %23, %24 : vector<256x128xf32>
    %c0_12 = arith.constant 0 : index
    %c0_13 = arith.constant 0 : index
    %26 = vector.load %arg4[%c0_12, %c0_13] : memref<4x128xf32, #tpu.memory_space<vmem>>, vector<1x128xf32>
    %27 = vector.broadcast %26 : vector<1x128xf32> to vector<256x128xf32>
    %28 = arith.addf %25, %27 : vector<256x128xf32>
    %cst_14 = arith.constant 0.000000e+00 : f32
    %29 = vector.broadcast %cst_14 : f32 to vector<256x128xf32>
    %30 = arith.maximumf %28, %29 : vector<256x128xf32>
    %31 = arith.truncf %30 : vector<256x128xf32> to vector<256x128xbf16>
    %c0_15 = arith.constant 0 : index
    %c0_16 = arith.constant 0 : index
    %c0_17 = arith.constant 0 : index
    %32 = vector.load %arg5[%c0_15, %c0_16, %c0_17] : memref<4x128x128xbf16, #tpu.memory_space<vmem>>, vector<1x128x128xbf16>
    %33 = vector.shape_cast %32 : vector<1x128x128xbf16> to vector<128x128xbf16>
    %cst_18 = arith.constant dense<0.000000e+00> : vector<256x128xf32>
    %34 = tpu.matmul %31, %33, %cst_18 {dimension_numbers = #tpu.dot_dimension_numbers<[1], [0], [0], [1], [0, 0, 1, 1], [], []>} : vector<256x128xbf16>, vector<128x128xbf16>, vector<256x128xf32> -> vector<256x128xf32>
    %c0_19 = arith.constant 0 : index
    %c0_20 = arith.constant 0 : index
    %35 = vector.load %arg6[%c0_19, %c0_20] : memref<4x128xf32, #tpu.memory_space<vmem>>, vector<1x128xf32>
    %36 = vector.broadcast %35 : vector<1x128xf32> to vector<256x128xf32>
    %37 = arith.addf %34, %36 : vector<256x128xf32>
    %cst_21 = arith.constant dense<0.000000e+00> : vector<128xf32>
    %38 = vector.multi_reduction <add>, %37, %cst_21 [0] : vector<256x128xf32> to vector<128xf32>
    %39 = vector.shape_cast %38 : vector<128xf32> to vector<1x128xf32>
    %cst_22 = arith.constant 3.906250e-03 : f32
    %40 = vector.broadcast %cst_22 : f32 to vector<1x128xf32>
    %41 = arith.mulf %39, %40 : vector<1x128xf32>
    %42 = arith.mulf %37, %37 : vector<256x128xf32>
    %cst_23 = arith.constant dense<0.000000e+00> : vector<128xf32>
    %43 = vector.multi_reduction <add>, %42, %cst_23 [0] : vector<256x128xf32> to vector<128xf32>
    %44 = vector.shape_cast %43 : vector<128xf32> to vector<1x128xf32>
    %cst_24 = arith.constant 3.906250e-03 : f32
    %45 = vector.broadcast %cst_24 : f32 to vector<1x128xf32>
    %46 = arith.mulf %44, %45 : vector<1x128xf32>
    %47 = arith.mulf %41, %41 : vector<1x128xf32>
    %48 = arith.subf %46, %47 : vector<1x128xf32>
    %cst_25 = arith.constant 9.99999974E-6 : f32
    %49 = vector.broadcast %cst_25 : f32 to vector<1x128xf32>
    %50 = arith.addf %48, %49 : vector<1x128xf32>
    %51 = math.rsqrt %50 : vector<1x128xf32>
    %c1 = arith.constant 1 : index
    %c0_26 = arith.constant 0 : index
    %52 = vector.load %arg3[%c1, %c0_26] : memref<4x128xf32, #tpu.memory_space<vmem>>, vector<1x128xf32>
    %53 = arith.mulf %51, %52 : vector<1x128xf32>
    %54 = vector.broadcast %41 : vector<1x128xf32> to vector<256x128xf32>
    %55 = arith.subf %37, %54 : vector<256x128xf32>
    %56 = vector.broadcast %53 : vector<1x128xf32> to vector<256x128xf32>
    %57 = arith.mulf %55, %56 : vector<256x128xf32>
    %c1_27 = arith.constant 1 : index
    %c0_28 = arith.constant 0 : index
    %58 = vector.load %arg4[%c1_27, %c0_28] : memref<4x128xf32, #tpu.memory_space<vmem>>, vector<1x128xf32>
    %59 = vector.broadcast %58 : vector<1x128xf32> to vector<256x128xf32>
    %60 = arith.addf %57, %59 : vector<256x128xf32>
    %cst_29 = arith.constant 0.000000e+00 : f32
    %61 = vector.broadcast %cst_29 : f32 to vector<256x128xf32>
    %62 = arith.maximumf %60, %61 : vector<256x128xf32>
    %63 = arith.truncf %62 : vector<256x128xf32> to vector<256x128xbf16>
    %c1_30 = arith.constant 1 : index
    %c0_31 = arith.constant 0 : index
    %c0_32 = arith.constant 0 : index
    %64 = vector.load %arg5[%c1_30, %c0_31, %c0_32] : memref<4x128x128xbf16, #tpu.memory_space<vmem>>, vector<1x128x128xbf16>
    %65 = vector.shape_cast %64 : vector<1x128x128xbf16> to vector<128x128xbf16>
    %cst_33 = arith.constant dense<0.000000e+00> : vector<256x128xf32>
    %66 = tpu.matmul %63, %65, %cst_33 {dimension_numbers = #tpu.dot_dimension_numbers<[1], [0], [0], [1], [0, 0, 1, 1], [], []>} : vector<256x128xbf16>, vector<128x128xbf16>, vector<256x128xf32> -> vector<256x128xf32>
    %c1_34 = arith.constant 1 : index
    %c0_35 = arith.constant 0 : index
    %67 = vector.load %arg6[%c1_34, %c0_35] : memref<4x128xf32, #tpu.memory_space<vmem>>, vector<1x128xf32>
    %68 = vector.broadcast %67 : vector<1x128xf32> to vector<256x128xf32>
    %69 = arith.addf %66, %68 : vector<256x128xf32>
    %70 = arith.addf %5, %69 : vector<256x128xf32>
    %cst_36 = arith.constant 5.000000e-01 : f32
    %71 = vector.broadcast %cst_36 : f32 to vector<256x128xf32>
    %72 = arith.mulf %70, %71 : vector<256x128xf32>
    %cst_37 = arith.constant dense<0.000000e+00> : vector<128xf32>
    %73 = vector.multi_reduction <add>, %72, %cst_37 [0] : vector<256x128xf32> to vector<128xf32>
    %74 = vector.shape_cast %73 : vector<128xf32> to vector<1x128xf32>
    %cst_38 = arith.constant 3.906250e-03 : f32
    %75 = vector.broadcast %cst_38 : f32 to vector<1x128xf32>
    %76 = arith.mulf %74, %75 : vector<1x128xf32>
    %77 = arith.mulf %72, %72 : vector<256x128xf32>
    %cst_39 = arith.constant dense<0.000000e+00> : vector<128xf32>
    %78 = vector.multi_reduction <add>, %77, %cst_39 [0] : vector<256x128xf32> to vector<128xf32>
    %79 = vector.shape_cast %78 : vector<128xf32> to vector<1x128xf32>
    %cst_40 = arith.constant 3.906250e-03 : f32
    %80 = vector.broadcast %cst_40 : f32 to vector<1x128xf32>
    %81 = arith.mulf %79, %80 : vector<1x128xf32>
    %82 = arith.mulf %76, %76 : vector<1x128xf32>
    %83 = arith.subf %81, %82 : vector<1x128xf32>
    %cst_41 = arith.constant 9.99999974E-6 : f32
    %84 = vector.broadcast %cst_41 : f32 to vector<1x128xf32>
    %85 = arith.addf %83, %84 : vector<1x128xf32>
    %86 = math.rsqrt %85 : vector<1x128xf32>
    %c2 = arith.constant 2 : index
    %c0_42 = arith.constant 0 : index
    %87 = vector.load %arg3[%c2, %c0_42] : memref<4x128xf32, #tpu.memory_space<vmem>>, vector<1x128xf32>
    %88 = arith.mulf %86, %87 : vector<1x128xf32>
    %89 = vector.broadcast %76 : vector<1x128xf32> to vector<256x128xf32>
    %90 = arith.subf %72, %89 : vector<256x128xf32>
    %91 = vector.broadcast %88 : vector<1x128xf32> to vector<256x128xf32>
    %92 = arith.mulf %90, %91 : vector<256x128xf32>
    %c2_43 = arith.constant 2 : index
    %c0_44 = arith.constant 0 : index
    %93 = vector.load %arg4[%c2_43, %c0_44] : memref<4x128xf32, #tpu.memory_space<vmem>>, vector<1x128xf32>
    %94 = vector.broadcast %93 : vector<1x128xf32> to vector<256x128xf32>
    %95 = arith.addf %92, %94 : vector<256x128xf32>
    %cst_45 = arith.constant 0.000000e+00 : f32
    %96 = vector.broadcast %cst_45 : f32 to vector<256x128xf32>
    %97 = arith.maximumf %95, %96 : vector<256x128xf32>
    %98 = arith.truncf %97 : vector<256x128xf32> to vector<256x128xbf16>
    %c2_46 = arith.constant 2 : index
    %c0_47 = arith.constant 0 : index
    %c0_48 = arith.constant 0 : index
    %99 = vector.load %arg5[%c2_46, %c0_47, %c0_48] : memref<4x128x128xbf16, #tpu.memory_space<vmem>>, vector<1x128x128xbf16>
    %100 = vector.shape_cast %99 : vector<1x128x128xbf16> to vector<128x128xbf16>
    %cst_49 = arith.constant dense<0.000000e+00> : vector<256x128xf32>
    %101 = tpu.matmul %98, %100, %cst_49 {dimension_numbers = #tpu.dot_dimension_numbers<[1], [0], [0], [1], [0, 0, 1, 1], [], []>} : vector<256x128xbf16>, vector<128x128xbf16>, vector<256x128xf32> -> vector<256x128xf32>
    %c2_50 = arith.constant 2 : index
    %c0_51 = arith.constant 0 : index
    %102 = vector.load %arg6[%c2_50, %c0_51] : memref<4x128xf32, #tpu.memory_space<vmem>>, vector<1x128xf32>
    %103 = vector.broadcast %102 : vector<1x128xf32> to vector<256x128xf32>
    %104 = arith.addf %101, %103 : vector<256x128xf32>
    %cst_52 = arith.constant dense<0.000000e+00> : vector<128xf32>
    %105 = vector.multi_reduction <add>, %104, %cst_52 [0] : vector<256x128xf32> to vector<128xf32>
    %106 = vector.shape_cast %105 : vector<128xf32> to vector<1x128xf32>
    %cst_53 = arith.constant 3.906250e-03 : f32
    %107 = vector.broadcast %cst_53 : f32 to vector<1x128xf32>
    %108 = arith.mulf %106, %107 : vector<1x128xf32>
    %109 = arith.mulf %104, %104 : vector<256x128xf32>
    %cst_54 = arith.constant dense<0.000000e+00> : vector<128xf32>
    %110 = vector.multi_reduction <add>, %109, %cst_54 [0] : vector<256x128xf32> to vector<128xf32>
    %111 = vector.shape_cast %110 : vector<128xf32> to vector<1x128xf32>
    %cst_55 = arith.constant 3.906250e-03 : f32
    %112 = vector.broadcast %cst_55 : f32 to vector<1x128xf32>
    %113 = arith.mulf %111, %112 : vector<1x128xf32>
    %114 = arith.mulf %108, %108 : vector<1x128xf32>
    %115 = arith.subf %113, %114 : vector<1x128xf32>
    %cst_56 = arith.constant 9.99999974E-6 : f32
    %116 = vector.broadcast %cst_56 : f32 to vector<1x128xf32>
    %117 = arith.addf %115, %116 : vector<1x128xf32>
    %118 = math.rsqrt %117 : vector<1x128xf32>
    %c3 = arith.constant 3 : index
    %c0_57 = arith.constant 0 : index
    %119 = vector.load %arg3[%c3, %c0_57] : memref<4x128xf32, #tpu.memory_space<vmem>>, vector<1x128xf32>
    %120 = arith.mulf %118, %119 : vector<1x128xf32>
    %121 = vector.broadcast %108 : vector<1x128xf32> to vector<256x128xf32>
    %122 = arith.subf %104, %121 : vector<256x128xf32>
    %123 = vector.broadcast %120 : vector<1x128xf32> to vector<256x128xf32>
    %124 = arith.mulf %122, %123 : vector<256x128xf32>
    %c3_58 = arith.constant 3 : index
    %c0_59 = arith.constant 0 : index
    %125 = vector.load %arg4[%c3_58, %c0_59] : memref<4x128xf32, #tpu.memory_space<vmem>>, vector<1x128xf32>
    %126 = vector.broadcast %125 : vector<1x128xf32> to vector<256x128xf32>
    %127 = arith.addf %124, %126 : vector<256x128xf32>
    %cst_60 = arith.constant 0.000000e+00 : f32
    %128 = vector.broadcast %cst_60 : f32 to vector<256x128xf32>
    %129 = arith.maximumf %127, %128 : vector<256x128xf32>
    %130 = arith.truncf %129 : vector<256x128xf32> to vector<256x128xbf16>
    %c3_61 = arith.constant 3 : index
    %c0_62 = arith.constant 0 : index
    %c0_63 = arith.constant 0 : index
    %131 = vector.load %arg5[%c3_61, %c0_62, %c0_63] : memref<4x128x128xbf16, #tpu.memory_space<vmem>>, vector<1x128x128xbf16>
    %132 = vector.shape_cast %131 : vector<1x128x128xbf16> to vector<128x128xbf16>
    %cst_64 = arith.constant dense<0.000000e+00> : vector<256x128xf32>
    %133 = tpu.matmul %130, %132, %cst_64 {dimension_numbers = #tpu.dot_dimension_numbers<[1], [0], [0], [1], [0, 0, 1, 1], [], []>} : vector<256x128xbf16>, vector<128x128xbf16>, vector<256x128xf32> -> vector<256x128xf32>
    %c3_65 = arith.constant 3 : index
    %c0_66 = arith.constant 0 : index
    %134 = vector.load %arg6[%c3_65, %c0_66] : memref<4x128xf32, #tpu.memory_space<vmem>>, vector<1x128xf32>
    %135 = vector.broadcast %134 : vector<1x128xf32> to vector<256x128xf32>
    %136 = arith.addf %133, %135 : vector<256x128xf32>
    %137 = arith.addf %72, %136 : vector<256x128xf32>
    %cst_67 = arith.constant 5.000000e-01 : f32
    %138 = vector.broadcast %cst_67 : f32 to vector<256x128xf32>
    %139 = arith.mulf %137, %138 : vector<256x128xf32>
    %c0_68 = arith.constant 0 : index
    %c0_69 = arith.constant 0 : index
    %140 = vector.load %arg7[%c0_68, %c0_69] : memref<256x128xf32, #tpu.memory_space<vmem>>, vector<256x128xf32>
    tpu.vector_store %arg7[%c0_68, %c0_69], %139 {strides = array<i32>} : memref<256x128xf32, #tpu.memory_space<vmem>>, vector<256x128xf32>,
    return
  }
}

</mosaic_0001>

<llo_original>
// kernel: resnet_forward.1
$region0: #{resnet_forward.1}
  #allocation0 [shape = 'u32[]', space=smem, size = 0x4, offset = 0x4, fixed_abs, tag = 'smem constant byte address 0x4 - core index']
  #allocation1 [shape = 'u32[144,128]{1,0:T(1,128)}', space=vmem, size = 0x12000, scoped, tag = 'internal scratch']
  %s0 = inlined_call_operand.vmem [shape: bf16[256,128], index: 0, kind: input, shape index: {}]
  %s1 = inlined_call_operand.vmem [shape: bf16[128,128], index: 1, kind: input, shape index: {}]
  %s2 = inlined_call_operand.vmem [shape: f32[1,128], index: 2, kind: input, shape index: {}]
  %s3 = inlined_call_operand.vmem [shape: f32[4,128], index: 3, kind: input, shape index: {}]
  %s4 = inlined_call_operand.vmem [shape: f32[4,128], index: 4, kind: input, shape index: {}]
  %s5 = inlined_call_operand.vmem [shape: bf16[4,128,128], index: 5, kind: input, shape index: {}]
  %s6 = inlined_call_operand.vmem [shape: f32[4,128], index: 6, kind: input, shape index: {}]
  %s7 = inlined_call_operand.hbm [shape: f32[256,128], index: 7, kind: output, shape index: {}]
  %s8 = sld [smem:[#allocation0]]
  $region38: #{resnet_forward.1} parent=0
    _
  %s10 = ssub.s32 1, %s8
  %s11 = scalar_select 0, %s10, %s8
  $region1: #{resnet_forward.1} parent=0
    #allocation2 [shape = 'u8[131072]{0}', space=vmem, size = 0x20000, scoped, tag = 'output window, operand 0, single buffered']
    #allocation3 [shape = 's32[1]{0}', space=sflag, size = 0x4, scoped, tag = 'scoped memory for resnet_forward.1']
    %12 = vsyncpa [#allocation3], 0
    // Predicated region
    $region2: #{resnet_forward.1} parent=1 // pred_check
      _
    $region3: #{resnet_forward.1} parent=1 // pred_check_branch
      %14 = sbr.rel (0) target = $region5
    $region4: #{resnet_forward.1} parent=1 // pred_region
      _
    $region5: #{resnet_forward.1} parent=1 // pred_fallthru
      _
    // Predicated region
    $region6: #{resnet_forward.1} parent=1 // pred_check
      _
    $region7: #{resnet_forward.1} parent=1 // pred_check_branch
      %16 = sbr.rel (0) target = $region9
    $region8: #{resnet_forward.1} parent=1 // pred_region
      _
    $region9: #{resnet_forward.1} parent=1 // pred_fallthru
      _
    // Predicated region
    $region10: #{resnet_forward.1} parent=1 // pred_check
      _
    $region11: #{resnet_forward.1} parent=1 // pred_check_branch
      %18 = sbr.rel (0) target = $region13
    $region12: #{resnet_forward.1} parent=1 // pred_region
      _
    $region13: #{resnet_forward.1} parent=1 // pred_fallthru
      _
    // Predicated region
    $region14: #{resnet_forward.1} parent=1 // pred_check
      _
    $region15: #{resnet_forward.1} parent=1 // pred_check_branch
      %20 = sbr.rel (0) target = $region17
    $region16: #{resnet_forward.1} parent=1 // pred_region
      _
    $region17: #{resnet_forward.1} parent=1 // pred_fallthru
      _
    // Predicated region
    $region18: #{resnet_forward.1} parent=1 // pred_check
      _
    $region19: #{resnet_forward.1} parent=1 // pred_check_branch
      %22 = sbr.rel (0) target = $region21
    $region20: #{resnet_forward.1} parent=1 // pred_region
      _
    $region21: #{resnet_forward.1} parent=1 // pred_fallthru
      _
    // Predicated region
    $region22: #{resnet_forward.1} parent=1 // pred_check
      _
    $region23: #{resnet_forward.1} parent=1 // pred_check_branch
      %24 = sbr.rel (0) target = $region25
    $region24: #{resnet_forward.1} parent=1 // pred_region
      _
    $region25: #{resnet_forward.1} parent=1 // pred_fallthru
      _
    // Predicated region
    $region26: #{resnet_forward.1} parent=1 // pred_check
      _
    $region27: #{resnet_forward.1} parent=1 // pred_check_branch
      %26 = sbr.rel (0) target = $region29
    $region28: #{resnet_forward.1} parent=1 // pred_region
      _
    $region29: #{resnet_forward.1} parent=1 // pred_fallthru
      _
    %v28 = vld [vmem:[%s0] sm:$0xf]
    %v29 = vld [vmem:[%s0 + $0x4] sm:$0xf]
    %v30 = vld [vmem:[%s0 + $0x8] sm:$0xf]
    %v31 = vld [vmem:[%s0 + $0xc] sm:$0xf]
    %v32 = vld [vmem:[%s0 + $0x10] sm:$0xf]
    %v33 = vld [vmem:[%s0 + $0x14] sm:$0xf]
    %v34 = vld [vmem:[%s0 + $0x18] sm:$0xf]
    %v35 = vld [vmem:[%s0 + $0x1c] sm:$0xf]
    %v36 = vld [vmem:[%s0 + $0x20] sm:$0xf]
    %v37 = vld [vmem:[%s0 + $0x24] sm:$0xf]
    %v38 = vld [vmem:[%s0 + $0x28] sm:$0xf]
    %v39 = vld [vmem:[%s0 + $0x2c] sm:$0xf]
    %v40 = vld [vmem:[%s0 + $0x30] sm:$0xf]
    %v41 = vld [vmem:[%s0 + $0x34] sm:$0xf]
    %v42 = vld [vmem:[%s0 + $0x38] sm:$0xf]
    %v43 = vld [vmem:[%s0 + $0x3c] sm:$0xf]
    %v44 = vld [vmem:[%s0 + $0x40] sm:$0xf]
    %v45 = vld [vmem:[%s0 + $0x44] sm:$0xf]
    %v46 = vld [vmem:[%s0 + $0x48] sm:$0xf]
    %v47 = vld [vmem:[%s0 + $0x4c] sm:$0xf]
    %v48 = vld [vmem:[%s0 + $0x50] sm:$0xf]
    %v49 = vld [vmem:[%s0 + $0x54] sm:$0xf]
    %v50 = vld [vmem:[%s0 + $0x58] sm:$0xf]
    %v51 = vld [vmem:[%s0 + $0x5c] sm:$0xf]
    %v52 = vld [vmem:[%s0 + $0x60] sm:$0xf]
    %v53 = vld [vmem:[%s0 + $0x64] sm:$0xf]
    %v54 = vld [vmem:[%s0 + $0x68] sm:$0xf]
    %v55 = vld [vmem:[%s0 + $0x6c] sm:$0xf]
    %v56 = vld [vmem:[%s0 + $0x70] sm:$0xf]
    %v57 = vld [vmem:[%s0 + $0x74] sm:$0xf]
    %v58 = vld [vmem:[%s0 + $0x78] sm:$0xf]
    %v59 = vld [vmem:[%s0 + $0x7c] sm:$0xf]
    %v60 = vld [vmem:[%s1] sm:$0xf]
    %v61 = vld [vmem:[%s1 + $0x4] sm:$0xf]
    %v62 = vld [vmem:[%s1 + $0x8] sm:$0xf]
    %v63 = vld [vmem:[%s1 + $0xc] sm:$0xf]
    %v64 = vld [vmem:[%s1 + $0x10] sm:$0xf]
    %v65 = vld [vmem:[%s1 + $0x14] sm:$0xf]
    %v66 = vld [vmem:[%s1 + $0x18] sm:$0xf]
    %v67 = vld [vmem:[%s1 + $0x1c] sm:$0xf]
    %v68 = vld [vmem:[%s1 + $0x20] sm:$0xf]
    %v69 = vld [vmem:[%s1 + $0x24] sm:$0xf]
    %v70 = vld [vmem:[%s1 + $0x28] sm:$0xf]
    %v71 = vld [vmem:[%s1 + $0x2c] sm:$0xf]
    %v72 = vld [vmem:[%s1 + $0x30] sm:$0xf]
    %v73 = vld [vmem:[%s1 + $0x34] sm:$0xf]
    %v74 = vld [vmem:[%s1 + $0x38] sm:$0xf]
    %v75 = vld [vmem:[%s1 + $0x3c] sm:$0xf]
    %v76 = vld [vmem:[%s2] sm:$0x1]
    %v78 = vlaneseq
    %v79 = vshrl.u32 %v78, 7
    %v80 = vsub.s32 0, %v79
    %v81 = vrot.slane %v76, %v80
    %v115 = vunpack.c.l.b16 %v28
    %v116 = vunpack.c.l.b16 %v29
    %v117 = vunpack.c.l.b16 %v30
    %v118 = vunpack.c.l.b16 %v31
    %v119 = vunpack.c.l.b16 %v32
    %v120 = vunpack.c.l.b16 %v33
    %v121 = vunpack.c.l.b16 %v34
    %v122 = vunpack.c.l.b16 %v35
    %v123 = vunpack.c.l.b16 %v36
    %v124 = vunpack.c.l.b16 %v37
    %v125 = vunpack.c.l.b16 %v38
    %v126 = vunpack.c.l.b16 %v39
    %v127 = vunpack.c.l.b16 %v40
    %v128 = vunpack.c.l.b16 %v41
    %v129 = vunpack.c.l.b16 %v42
    %v130 = vunpack.c.l.b16 %v43
    %v131 = vunpack.c.l.b16 %v44
    %v132 = vunpack.c.l.b16 %v45
    %v133 = vunpack.c.l.b16 %v46
    %v134 = vunpack.c.l.b16 %v47
    %v135 = vunpack.c.l.b16 %v48
    %v136 = vunpack.c.l.b16 %v49
    %v137 = vunpack.c.l.b16 %v50
    %v138 = vunpack.c.l.b16 %v51
    %v139 = vunpack.c.l.b16 %v52
    %v140 = vunpack.c.l.b16 %v53
    %v141 = vunpack.c.l.b16 %v54
    %v142 = vunpack.c.l.b16 %v55
    %v143 = vunpack.c.l.b16 %v56
    %v144 = vunpack.c.l.b16 %v57
    %v145 = vunpack.c.l.b16 %v58
    %v146 = vunpack.c.l.b16 %v59
    %v147 = vpack.c.b16 %v116, %v115
    %v148 = vpack.c.b16 %v118, %v117
    %v149 = vpack.c.b16 %v120, %v119
    %v150 = vpack.c.b16 %v122, %v121
    %v151 = vpack.c.b16 %v124, %v123
    %v152 = vpack.c.b16 %v126, %v125
    %v153 = vpack.c.b16 %v128, %v127
    %v154 = vpack.c.b16 %v130, %v129
    %v155 = vpack.c.b16 %v132, %v131
    %v156 = vpack.c.b16 %v134, %v133
    %v157 = vpack.c.b16 %v136, %v135
    %v158 = vpack.c.b16 %v138, %v137
    %v159 = vpack.c.b16 %v140, %v139
    %v160 = vpack.c.b16 %v142, %v141
    %v161 = vpack.c.b16 %v144, %v143
    %v162 = vpack.c.b16 %v146, %v145
    %v195 = vunpack.c.l.b16 %v60
    %v196 = vunpack.c.l.b16 %v61
    %v197 = vunpack.c.l.b16 %v62
    %v198 = vunpack.c.l.b16 %v63
    %v199 = vunpack.c.l.b16 %v64
    %v200 = vunpack.c.l.b16 %v65
    %v201 = vunpack.c.l.b16 %v66
    %v202 = vunpack.c.l.b16 %v67
    %v203 = vunpack.c.l.b16 %v68
    %v204 = vunpack.c.l.b16 %v69
    %v205 = vunpack.c.l.b16 %v70
    %v206 = vunpack.c.l.b16 %v71
    %v207 = vunpack.c.l.b16 %v72
    %v208 = vunpack.c.l.b16 %v73
    %v209 = vunpack.c.l.b16 %v74
    %v210 = vunpack.c.l.b16 %v75
    %v211 = vpack.c.b16 %v196, %v195
    %v212 = vpack.c.b16 %v198, %v197
    %v213 = vpack.c.b16 %v200, %v199
    %v214 = vpack.c.b16 %v202, %v201
    %v215 = vpack.c.b16 %v204, %v203
    %v216 = vpack.c.b16 %v206, %v205
    %v217 = vpack.c.b16 %v208, %v207
    %v218 = vpack.c.b16 %v210, %v209
    %227 = vmatprep.subr.bf16.mxu0 0
    %228 = vmatpush1.bf16.msra.mxu0 %v218
    %229 = vmatprep.subr.bf16.mxu0 0
    %230 = vmatpush1.bf16.msra.mxu0 %v217
    %231 = vmatprep.subr.bf16.mxu0 0
    %232 = vmatpush1.bf16.msra.mxu0 %v216
    %233 = vmatprep.subr.bf16.mxu0 0
    %234 = vmatpush1.bf16.msra.mxu0 %v215
    %235 = vmatprep.subr.bf16.mxu0 0
    %236 = vmatpush1.bf16.msra.mxu0 %v214
    %237 = vmatprep.subr.bf16.mxu0 0
    %238 = vmatpush1.bf16.msra.mxu0 %v213
    %239 = vmatprep.subr.bf16.mxu0 0
    %240 = vmatpush1.bf16.msra.mxu0 %v212
    %241 = vmatprep.subr.bf16.mxu0 0
    %242 = vmatpush1.bf16.msra.mxu0 %v211
    %243 = vmatprep.subr.bf16.mxu0 0
    %244 = vmatpush2.bf16.msra.mxu0 0
    %245 = vmatprep.subr.bf16.mxu0 0
    %246 = vmatpush2.bf16.msra.mxu0 0
    %247 = vmatprep.subr.bf16.mxu0 0
    %248 = vmatpush2.bf16.msra.mxu0 0
    %249 = vmatprep.subr.bf16.mxu0 0
    %250 = vmatpush2.bf16.msra.mxu0 0
    %251 = vmatprep.subr.bf16.mxu0 0
    %252 = vmatpush2.bf16.msra.mxu0 0
    %253 = vmatprep.subr.bf16.mxu0 0
    %254 = vmatpush2.bf16.msra.mxu0 0
    %255 = vmatprep.subr.bf16.mxu0 0
    %256 = vmatpush2.bf16.msra.mxu0 0
    %257 = vmatprep.subr.bf16.mxu0 0
    %258 = vmatpush2.bf16.msra.mxu0 0
    %259 = vmatprep.mubr.bf16.mxu0 0
    %260 = vmatmul.mubr.bf16.gmra.mxu0 %v147
    %v261 = vpop.f32.mrf.mxu0
    %v262 = vadd.f32 %v81, %v261
    %v263 = vpop.f32.mrf.mxu0
    %v264 = vpop.f32.mrf.mxu0
    %v265 = vadd.f32 %v81, %v264
    %v266 = vpop.f32.mrf.mxu0
    %267 = vmatprep.mubr.bf16.mxu0 0
    %268 = vmatmul.mubr.bf16.gmra.mxu0 %v148
    %v269 = vpop.f32.mrf.mxu0
    %v270 = vadd.f32 %v81, %v269
    %v271 = vpop.f32.mrf.mxu0
    %v272 = vpop.f32.mrf.mxu0
    %v273 = vadd.f32 %v81, %v272
    %v274 = vpop.f32.mrf.mxu0
    %275 = vmatprep.mubr.bf16.mxu0 0
    %276 = vmatmul.mubr.bf16.gmra.mxu0 %v149
    %v277 = vpop.f32.mrf.mxu0
    %v278 = vadd.f32 %v81, %v277
    %v279 = vpop.f32.mrf.mxu0
    %v280 = vpop.f32.mrf.mxu0
    %v281 = vadd.f32 %v81, %v280
    %v282 = vpop.f32.mrf.mxu0
    %283 = vmatprep.mubr.bf16.mxu0 0
    %284 = vmatmul.mubr.bf16.gmra.mxu0 %v150
    %v285 = vpop.f32.mrf.mxu0
    %v286 = vadd.f32 %v81, %v285
    %v287 = vpop.f32.mrf.mxu0
    %v288 = vpop.f32.mrf.mxu0
    %v289 = vadd.f32 %v81, %v288
    %v290 = vpop.f32.mrf.mxu0
    %291 = vmatprep.mubr.bf16.mxu0 0
    %292 = vmatmul.mubr.bf16.gmra.mxu0 %v151
    %v293 = vpop.f32.mrf.mxu0
    %v294 = vadd.f32 %v81, %v293
    %v295 = vpop.f32.mrf.mxu0
    %v296 = vpop.f32.mrf.mxu0
    %v297 = vadd.f32 %v81, %v296
    %v298 = vpop.f32.mrf.mxu0
    %299 = vmatprep.mubr.bf16.mxu0 0
    %300 = vmatmul.mubr.bf16.gmra.mxu0 %v152
    %v301 = vpop.f32.mrf.mxu0
    %v302 = vadd.f32 %v81, %v301
    %v303 = vpop.f32.mrf.mxu0
    %v304 = vpop.f32.mrf.mxu0
    %v305 = vadd.f32 %v81, %v304
    %v306 = vpop.f32.mrf.mxu0
    %307 = vmatprep.mubr.bf16.mxu0 0
    %308 = vmatmul.mubr.bf16.gmra.mxu0 %v153
    %v309 = vpop.f32.mrf.mxu0
    %v310 = vadd.f32 %v81, %v309
    %v311 = vpop.f32.mrf.mxu0
    %v312 = vpop.f32.mrf.mxu0
    %v313 = vadd.f32 %v81, %v312
    %v314 = vpop.f32.mrf.mxu0
    %315 = vmatprep.mubr.bf16.mxu0 0
    %316 = vmatmul.mubr.bf16.gmra.mxu0 %v154
    %v317 = vpop.f32.mrf.mxu0
    %v318 = vadd.f32 %v81, %v317
    %v319 = vpop.f32.mrf.mxu0
    %v320 = vpop.f32.mrf.mxu0
    %v321 = vadd.f32 %v81, %v320
    %v322 = vpop.f32.mrf.mxu0
    %323 = vmatprep.mubr.bf16.mxu0 0
    %324 = vmatmul.mubr.bf16.gmra.mxu0 %v155
    %v325 = vpop.f32.mrf.mxu0
    %v326 = vadd.f32 %v81, %v325
    %v327 = vpop.f32.mrf.mxu0
    %v328 = vpop.f32.mrf.mxu0
    %v329 = vadd.f32 %v81, %v328
    %v330 = vpop.f32.mrf.mxu0
    %331 = vmatprep.mubr.bf16.mxu0 0
    %332 = vmatmul.mubr.bf16.gmra.mxu0 %v156
    %v333 = vpop.f32.mrf.mxu0
    %v334 = vadd.f32 %v81, %v333
    %v335 = vpop.f32.mrf.mxu0
    %v336 = vpop.f32.mrf.mxu0
    %v337 = vadd.f32 %v81, %v336
    %v338 = vpop.f32.mrf.mxu0
    %339 = vmatprep.mubr.bf16.mxu0 0
    %340 = vmatmul.mubr.bf16.gmra.mxu0 %v157
    %v341 = vpop.f32.mrf.mxu0
    %v342 = vadd.f32 %v81, %v341
    %v343 = vpop.f32.mrf.mxu0
    %v344 = vpop.f32.mrf.mxu0
    %v345 = vadd.f32 %v81, %v344
    %v346 = vpop.f32.mrf.mxu0
    %347 = vmatprep.mubr.bf16.mxu0 0
    %348 = vmatmul.mubr.bf16.gmra.mxu0 %v158
    %v349 = vpop.f32.mrf.mxu0
    %v350 = vadd.f32 %v81, %v349
    %v351 = vpop.f32.mrf.mxu0
    %v352 = vpop.f32.mrf.mxu0
    %v353 = vadd.f32 %v81, %v352
    %v354 = vpop.f32.mrf.mxu0
    %355 = vmatprep.mubr.bf16.mxu0 0
    %356 = vmatmul.mubr.bf16.gmra.mxu0 %v159
    %v357 = vpop.f32.mrf.mxu0
    %v358 = vadd.f32 %v81, %v357
    %v359 = vpop.f32.mrf.mxu0
    %v360 = vpop.f32.mrf.mxu0
    %v361 = vadd.f32 %v81, %v360
    %v362 = vpop.f32.mrf.mxu0
    %363 = vmatprep.mubr.bf16.mxu0 0
    %364 = vmatmul.mubr.bf16.gmra.mxu0 %v160
    %v365 = vpop.f32.mrf.mxu0
    %v366 = vadd.f32 %v81, %v365
    %v367 = vpop.f32.mrf.mxu0
    %v368 = vpop.f32.mrf.mxu0
    %v369 = vadd.f32 %v81, %v368
    %v370 = vpop.f32.mrf.mxu0
    %371 = vmatprep.mubr.bf16.mxu0 0
    %372 = vmatmul.mubr.bf16.gmra.mxu0 %v161
    %v373 = vpop.f32.mrf.mxu0
    %v374 = vadd.f32 %v81, %v373
    %v375 = vpop.f32.mrf.mxu0
    %v376 = vpop.f32.mrf.mxu0
    %v377 = vadd.f32 %v81, %v376
    %v378 = vpop.f32.mrf.mxu0
    %379 = vmatprep.mubr.bf16.mxu0 0
    %380 = vmatmul.mubr.bf16.gmra.mxu0 %v162
    %v381 = vpop.f32.mrf.mxu0
    %v382 = vadd.f32 %v81, %v381
    %v383 = vpop.f32.mrf.mxu0
    %v384 = vpop.f32.mrf.mxu0
    %v385 = vadd.f32 %v81, %v384
    %v386 = vpop.f32.mrf.mxu0
    %387 = vdwg.mxu0
    %v388 = vadd.f32 %v262, %v265
    %v389 = vadd.f32 %v388, %v270
    %v390 = vadd.f32 %v389, %v273
    %v391 = vadd.f32 %v390, %v278
    %v392 = vadd.f32 %v391, %v281
    %v393 = vadd.f32 %v392, %v286
    %v394 = vadd.f32 %v393, %v289
    %v395 = vadd.f32 %v394, %v294
    %v396 = vadd.f32 %v395, %v297
    %v397 = vadd.f32 %v396, %v302
    %v398 = vadd.f32 %v397, %v305
    %v399 = vadd.f32 %v398, %v310
    %v400 = vadd.f32 %v399, %v313
    %v401 = vadd.f32 %v400, %v318
    %v402 = vadd.f32 %v401, %v321
    %v403 = vadd.f32 %v402, %v326
    %v404 = vadd.f32 %v403, %v329
    %v405 = vadd.f32 %v404, %v334
    %v406 = vadd.f32 %v405, %v337
    %v407 = vadd.f32 %v406, %v342
    %v408 = vadd.f32 %v407, %v345
    %v409 = vadd.f32 %v408, %v350
    %v410 = vadd.f32 %v409, %v353
    %v411 = vadd.f32 %v410, %v358
    %v412 = vadd.f32 %v411, %v361
    %v413 = vadd.f32 %v412, %v366
    %v414 = vadd.f32 %v413, %v369
    %v415 = vadd.f32 %v414, %v374
    %v416 = vadd.f32 %v415, %v377
    %v417 = vadd.f32 %v416, %v382
    %v418 = vadd.f32 %v417, %v385
    %v419 = vrot.slane %v418, 4
    %v420 = vadd.f32 %v418, %v419
    %v421 = vrot.slane %v420, 2
    %v422 = vadd.f32 %v420, %v421
    %v423 = vrot.slane %v422, 1
    %v424 = vadd.f32 %v422, %v423
    %v425 = vmul.f32 %v424, 0.00390625
    %v426 = vmul.f32 %v262, %v262
    %v427 = vmul.f32 %v265, %v265
    %v428 = vmul.f32 %v270, %v270
    %v429 = vmul.f32 %v273, %v273
    %v430 = vmul.f32 %v278, %v278
    %v431 = vmul.f32 %v281, %v281
    %v432 = vmul.f32 %v286, %v286
    %v433 = vmul.f32 %v289, %v289
    %v434 = vmul.f32 %v294, %v294
    %v435 = vmul.f32 %v297, %v297
    %v436 = vmul.f32 %v302, %v302
    %v437 = vmul.f32 %v305, %v305
    %v438 = vmul.f32 %v310, %v310
    %v439 = vmul.f32 %v313, %v313
    %v440 = vmul.f32 %v318, %v318
    %v441 = vmul.f32 %v321, %v321
    %v442 = vmul.f32 %v326, %v326
    %v443 = vmul.f32 %v329, %v329
    %v444 = vmul.f32 %v334, %v334
    %v445 = vmul.f32 %v337, %v337
    %v446 = vmul.f32 %v342, %v342
    %v447 = vmul.f32 %v345, %v345
    %v448 = vmul.f32 %v350, %v350
    %v449 = vmul.f32 %v353, %v353
    %v450 = vmul.f32 %v358, %v358
    %v451 = vmul.f32 %v361, %v361
    %v452 = vmul.f32 %v366, %v366
    %v453 = vmul.f32 %v369, %v369
    %v454 = vmul.f32 %v374, %v374
    %v455 = vmul.f32 %v377, %v377
    %v456 = vmul.f32 %v382, %v382
    %v457 = vmul.f32 %v385, %v385
    %v458 = vadd.f32 %v426, %v427
    %v459 = vadd.f32 %v458, %v428
    %v460 = vadd.f32 %v459, %v429
    %v461 = vadd.f32 %v460, %v430
    %v462 = vadd.f32 %v461, %v431
    %v463 = vadd.f32 %v462, %v432
    %v464 = vadd.f32 %v463, %v433
    %v465 = vadd.f32 %v464, %v434
    %v466 = vadd.f32 %v465, %v435
    %v467 = vadd.f32 %v466, %v436
    %v468 = vadd.f32 %v467, %v437
    %v469 = vadd.f32 %v468, %v438
    %v470 = vadd.f32 %v469, %v439
    %v471 = vadd.f32 %v470, %v440
    %v472 = vadd.f32 %v471, %v441
    %v473 = vadd.f32 %v472, %v442
    %v474 = vadd.f32 %v473, %v443
    %v475 = vadd.f32 %v474, %v444
    %v476 = vadd.f32 %v475, %v445
    %v477 = vadd.f32 %v476, %v446
    %v478 = vadd.f32 %v477, %v447
    %v479 = vadd.f32 %v478, %v448
    %v480 = vadd.f32 %v479, %v449
    %v481 = vadd.f32 %v480, %v450
    %v482 = vadd.f32 %v481, %v451
    %v483 = vadd.f32 %v482, %v452
    %v484 = vadd.f32 %v483, %v453
    %v485 = vadd.f32 %v484, %v454
    %v486 = vadd.f32 %v485, %v455
    %v487 = vadd.f32 %v486, %v456
    %v488 = vadd.f32 %v487, %v457
    %v489 = vrot.slane %v488, 4
    %v490 = vadd.f32 %v488, %v489
    %v491 = vrot.slane %v490, 2
    %v492 = vadd.f32 %v490, %v491
    %v493 = vrot.slane %v492, 1
    %v494 = vadd.f32 %v492, %v493
    %v495 = vmul.f32 %v494, 0.00390625
    %v496 = vmul.f32 %v425, %v425
    %v497 = vsub.f32 %v495, %v496
    %v498 = vadd.f32 %v497, 1e-05
    %v499 = vrsqrt.pop %v498
    %v500 = vld [vmem:[%s3] sm:$0x1]
    %v501 = vmul.f32 %v499, %v500
    %v502 = vsub.f32 %v262, %v425
    %v503 = vsub.f32 %v265, %v425
    %v504 = vsub.f32 %v270, %v425
    %v505 = vsub.f32 %v273, %v425
    %v506 = vsub.f32 %v278, %v425
    %v507 = vsub.f32 %v281, %v425
    %v508 = vsub.f32 %v286, %v425
    %v509 = vsub.f32 %v289, %v425
    %v510 = vsub.f32 %v294, %v425
    %v511 = vsub.f32 %v297, %v425
    %v512 = vsub.f32 %v302, %v425
    %v513 = vsub.f32 %v305, %v425
    %v514 = vsub.f32 %v310, %v425
    %v515 = vsub.f32 %v313, %v425
    %v516 = vsub.f32 %v318, %v425
    %v517 = vsub.f32 %v321, %v425
    %v518 = vsub.f32 %v326, %v425
    %v519 = vsub.f32 %v329, %v425
    %v520 = vsub.f32 %v334, %v425
    %v521 = vsub.f32 %v337, %v425
    %v522 = vsub.f32 %v342, %v425
    %v523 = vsub.f32 %v345, %v425
    %v524 = vsub.f32 %v350, %v425
    %v525 = vsub.f32 %v353, %v425
    %v526 = vsub.f32 %v358, %v425
    %v527 = vsub.f32 %v361, %v425
    %v528 = vsub.f32 %v366, %v425
    %v529 = vsub.f32 %v369, %v425
    %v530 = vsub.f32 %v374, %v425
    %v531 = vsub.f32 %v377, %v425
    %v532 = vsub.f32 %v382, %v425
    %v533 = vsub.f32 %v385, %v425
    %v534 = vlaneseq
    %v535 = vshrl.u32 %v534, 7
    %v536 = vsub.s32 0, %v535
    %v537 = vrot.slane %v501, %v536
    %v538 = vmul.f32 %v502, %v537
    %v539 = vmul.f32 %v503, %v537
    %v540 = vmul.f32 %v504, %v537
    %v541 = vmul.f32 %v505, %v537
    %v542 = vmul.f32 %v506, %v537
    %v543 = vmul.f32 %v507, %v537
    %v544 = vmul.f32 %v508, %v537
    %v545 = vmul.f32 %v509, %v537
    %v546 = vmul.f32 %v510, %v537
    %v547 = vmul.f32 %v511, %v537
    %v548 = vmul.f32 %v512, %v537
    %v549 = vmul.f32 %v513, %v537
    %v550 = vmul.f32 %v514, %v537
    %v551 = vmul.f32 %v515, %v537
    %v552 = vmul.f32 %v516, %v537
    %v553 = vmul.f32 %v517, %v537
    %v554 = vmul.f32 %v518, %v537
    %v555 = vmul.f32 %v519, %v537
    %v556 = vmul.f32 %v520, %v537
    %v557 = vmul.f32 %v521, %v537
    %v558 = vmul.f32 %v522, %v537
    %v559 = vmul.f32 %v523, %v537
    %v560 = vmul.f32 %v524, %v537
    %v561 = vmul.f32 %v525, %v537
    %v562 = vmul.f32 %v526, %v537
    %v563 = vmul.f32 %v527, %v537
    %v564 = vmul.f32 %v528, %v537
    %v565 = vmul.f32 %v529, %v537
    %v566 = vmul.f32 %v530, %v537
    %v567 = vmul.f32 %v531, %v537
    %v568 = vmul.f32 %v532, %v537
    %v569 = vmul.f32 %v533, %v537
    %v570 = vld [vmem:[%s4] sm:$0x1]
    %v571 = vlaneseq
    %v572 = vshrl.u32 %v571, 7
    %v573 = vsub.s32 0, %v572
    %v574 = vrot.slane %v570, %v573
    %v575 = vadd.f32 %v538, %v574
    %v576 = vadd.f32 %v539, %v574
    %v577 = vadd.f32 %v540, %v574
    %v578 = vadd.f32 %v541, %v574
    %v579 = vadd.f32 %v542, %v574
    %v580 = vadd.f32 %v543, %v574
    %v581 = vadd.f32 %v544, %v574
    %v582 = vadd.f32 %v545, %v574
    %v583 = vadd.f32 %v546, %v574
    %v584 = vadd.f32 %v547, %v574
    %v585 = vadd.f32 %v548, %v574
    %v586 = vadd.f32 %v549, %v574
    %v587 = vadd.f32 %v550, %v574
    %v588 = vadd.f32 %v551, %v574
    %v589 = vadd.f32 %v552, %v574
    %v590 = vadd.f32 %v553, %v574
    %v591 = vadd.f32 %v554, %v574
    %v592 = vadd.f32 %v555, %v574
    %v593 = vadd.f32 %v556, %v574
    %v594 = vadd.f32 %v557, %v574
    %v595 = vadd.f32 %v558, %v574
    %v596 = vadd.f32 %v559, %v574
    %v597 = vadd.f32 %v560, %v574
    %v598 = vadd.f32 %v561, %v574
    %v599 = vadd.f32 %v562, %v574
    %v600 = vadd.f32 %v563, %v574
    %v601 = vadd.f32 %v564, %v574
    %v602 = vadd.f32 %v565, %v574
    %v603 = vadd.f32 %v566, %v574
    %v604 = vadd.f32 %v567, %v574
    %v605 = vadd.f32 %v568, %v574
    %v606 = vadd.f32 %v569, %v574
    %v607 = vmax.f32 %v575, 0.0
    %v608 = vmax.f32 %v576, 0.0
    %v609 = vmax.f32 %v577, 0.0
    %v610 = vmax.f32 %v578, 0.0
    %v611 = vmax.f32 %v579, 0.0
    %v612 = vmax.f32 %v580, 0.0
    %v613 = vmax.f32 %v581, 0.0
    %v614 = vmax.f32 %v582, 0.0
    %v615 = vmax.f32 %v583, 0.0
    %v616 = vmax.f32 %v584, 0.0
    %v617 = vmax.f32 %v585, 0.0
    %v618 = vmax.f32 %v586, 0.0
    %v619 = vmax.f32 %v587, 0.0
    %v620 = vmax.f32 %v588, 0.0
    %v621 = vmax.f32 %v589, 0.0
    %v622 = vmax.f32 %v590, 0.0
    %v623 = vmax.f32 %v591, 0.0
    %v624 = vmax.f32 %v592, 0.0
    %v625 = vmax.f32 %v593, 0.0
    %v626 = vmax.f32 %v594, 0.0
    %v627 = vmax.f32 %v595, 0.0
    %v628 = vmax.f32 %v596, 0.0
    %v629 = vmax.f32 %v597, 0.0
    %v630 = vmax.f32 %v598, 0.0
    %v631 = vmax.f32 %v599, 0.0
    %v632 = vmax.f32 %v600, 0.0
    %v633 = vmax.f32 %v601, 0.0
    %v634 = vmax.f32 %v602, 0.0
    %v635 = vmax.f32 %v603, 0.0
    %v636 = vmax.f32 %v604, 0.0
    %v637 = vmax.f32 %v605, 0.0
    %v638 = vmax.f32 %v606, 0.0
    %v639 = vpack.c.bf16 %v608, %v607
    %v640 = vpack.c.bf16 %v610, %v609
    %v641 = vpack.c.bf16 %v612, %v611
    %v642 = vpack.c.bf16 %v614, %v613
    %v643 = vpack.c.bf16 %v616, %v615
    %v644 = vpack.c.bf16 %v618, %v617
    %v645 = vpack.c.bf16 %v620, %v619
    %v646 = vpack.c.bf16 %v622, %v621
    %v647 = vpack.c.bf16 %v624, %v623
    %v648 = vpack.c.bf16 %v626, %v625
    %v649 = vpack.c.bf16 %v628, %v627
    %v650 = vpack.c.bf16 %v630, %v629
    %v651 = vpack.c.bf16 %v632, %v631
    %v652 = vpack.c.bf16 %v634, %v633
    %v653 = vpack.c.bf16 %v636, %v635
    %v654 = vpack.c.bf16 %v638, %v637
    %v655 = vld [vmem:[%s5] sm:$0xf]
    %v656 = vld [vmem:[%s5 + $0x4] sm:$0xf]
    %v657 = vld [vmem:[%s5 + $0x8] sm:$0xf]
    %v658 = vld [vmem:[%s5 + $0xc] sm:$0xf]
    %v659 = vld [vmem:[%s5 + $0x10] sm:$0xf]
    %v660 = vld [vmem:[%s5 + $0x14] sm:$0xf]
    %v661 = vld [vmem:[%s5 + $0x18] sm:$0xf]
    %v662 = vld [vmem:[%s5 + $0x1c] sm:$0xf]
    %v663 = vld [vmem:[%s5 + $0x20] sm:$0xf]
    %v664 = vld [vmem:[%s5 + $0x24] sm:$0xf]
    %v665 = vld [vmem:[%s5 + $0x28] sm:$0xf]
    %v666 = vld [vmem:[%s5 + $0x2c] sm:$0xf]
    %v667 = vld [vmem:[%s5 + $0x30] sm:$0xf]
    %v668 = vld [vmem:[%s5 + $0x34] sm:$0xf]
    %v669 = vld [vmem:[%s5 + $0x38] sm:$0xf]
    %v670 = vld [vmem:[%s5 + $0x3c] sm:$0xf]
    %v671 = vld [vmem:[%s6] sm:$0x1]
    %v672 = vlaneseq
    %v673 = vshrl.u32 %v672, 7
    %v674 = vsub.s32 0, %v673
    %v675 = vrot.slane %v671, %v674
    %v692 = vunpack.c.l.b16 %v655
    %v693 = vunpack.c.l.b16 %v656
    %v694 = vunpack.c.l.b16 %v657
    %v695 = vunpack.c.l.b16 %v658
    %v696 = vunpack.c.l.b16 %v659
    %v697 = vunpack.c.l.b16 %v660
    %v698 = vunpack.c.l.b16 %v661
    %v699 = vunpack.c.l.b16 %v662
    %v700 = vunpack.c.l.b16 %v663
    %v701 = vunpack.c.l.b16 %v664
    %v702 = vunpack.c.l.b16 %v665
    %v703 = vunpack.c.l.b16 %v666
    %v704 = vunpack.c.l.b16 %v667
    %v705 = vunpack.c.l.b16 %v668
    %v706 = vunpack.c.l.b16 %v669
    %v707 = vunpack.c.l.b16 %v670
    %v708 = vpack.c.b16 %v693, %v692
    %v709 = vpack.c.b16 %v695, %v694
    %v710 = vpack.c.b16 %v697, %v696
    %v711 = vpack.c.b16 %v699, %v698
    %v712 = vpack.c.b16 %v701, %v700
    %v713 = vpack.c.b16 %v703, %v702
    %v714 = vpack.c.b16 %v705, %v704
    %v715 = vpack.c.b16 %v707, %v706
    %724 = vmatprep.subr.bf16.mxu0 0
    %725 = vmatpush1.bf16.msra.mxu0 %v715
    %726 = vmatprep.subr.bf16.mxu0 0
    %727 = vmatpush1.bf16.msra.mxu0 %v714
    %728 = vmatprep.subr.bf16.mxu0 0
    %729 = vmatpush1.bf16.msra.mxu0 %v713
    %730 = vmatprep.subr.bf16.mxu0 0
    %731 = vmatpush1.bf16.msra.mxu0 %v712
    %732 = vmatprep.subr.bf16.mxu0 0
    %733 = vmatpush1.bf16.msra.mxu0 %v711
    %734 = vmatprep.subr.bf16.mxu0 0
    %735 = vmatpush1.bf16.msra.mxu0 %v710
    %736 = vmatprep.subr.bf16.mxu0 0
    %737 = vmatpush1.bf16.msra.mxu0 %v709
    %738 = vmatprep.subr.bf16.mxu0 0
    %739 = vmatpush1.bf16.msra.mxu0 %v708
    %740 = vmatprep.subr.bf16.mxu0 0
    %741 = vmatpush2.bf16.msra.mxu0 0
    %742 = vmatprep.subr.bf16.mxu0 0
    %743 = vmatpush2.bf16.msra.mxu0 0
    %744 = vmatprep.subr.bf16.mxu0 0
    %745 = vmatpush2.bf16.msra.mxu0 0
    %746 = vmatprep.subr.bf16.mxu0 0
    %747 = vmatpush2.bf16.msra.mxu0 0
    %748 = vmatprep.subr.bf16.mxu0 0
    %749 = vmatpush2.bf16.msra.mxu0 0
    %750 = vmatprep.subr.bf16.mxu0 0
    %751 = vmatpush2.bf16.msra.mxu0 0
    %752 = vmatprep.subr.bf16.mxu0 0
    %753 = vmatpush2.bf16.msra.mxu0 0
    %754 = vmatprep.subr.bf16.mxu0 0
    %755 = vmatpush2.bf16.msra.mxu0 0
    %756 = vmatprep.mubr.bf16.mxu0 0
    %757 = vmatmul.mubr.bf16.gmra.mxu0 %v639
    %v758 = vpop.f32.mrf.mxu0
    %v759 = vadd.f32 %v675, %v758
    %v760 = vpop.f32.mrf.mxu0
    %v761 = vpop.f32.mrf.mxu0
    %v762 = vadd.f32 %v675, %v761
    %v763 = vpop.f32.mrf.mxu0
    %764 = vmatprep.mubr.bf16.mxu0 0
    %765 = vmatmul.mubr.bf16.gmra.mxu0 %v640
    %v766 = vpop.f32.mrf.mxu0
    %v767 = vadd.f32 %v675, %v766
    %v768 = vpop.f32.mrf.mxu0
    %v769 = vpop.f32.mrf.mxu0
    %v770 = vadd.f32 %v675, %v769
    %v771 = vpop.f32.mrf.mxu0
    %772 = vmatprep.mubr.bf16.mxu0 0
    %773 = vmatmul.mubr.bf16.gmra.mxu0 %v641
    %v774 = vpop.f32.mrf.mxu0
    %v775 = vadd.f32 %v675, %v774
    %v776 = vpop.f32.mrf.mxu0
    %v777 = vpop.f32.mrf.mxu0
    %v778 = vadd.f32 %v675, %v777
    %v779 = vpop.f32.mrf.mxu0
    %780 = vmatprep.mubr.bf16.mxu0 0
    %781 = vmatmul.mubr.bf16.gmra.mxu0 %v642
    %v782 = vpop.f32.mrf.mxu0
    %v783 = vadd.f32 %v675, %v782
    %v784 = vpop.f32.mrf.mxu0
    %v785 = vpop.f32.mrf.mxu0
    %v786 = vadd.f32 %v675, %v785
    %v787 = vpop.f32.mrf.mxu0
    %788 = vmatprep.mubr.bf16.mxu0 0
    %789 = vmatmul.mubr.bf16.gmra.mxu0 %v643
    %v790 = vpop.f32.mrf.mxu0
    %v791 = vadd.f32 %v675, %v790
    %v792 = vpop.f32.mrf.mxu0
    %v793 = vpop.f32.mrf.mxu0
    %v794 = vadd.f32 %v675, %v793
    %v795 = vpop.f32.mrf.mxu0
    %796 = vmatprep.mubr.bf16.mxu0 0
    %797 = vmatmul.mubr.bf16.gmra.mxu0 %v644
    %v798 = vpop.f32.mrf.mxu0
    %v799 = vadd.f32 %v675, %v798
    %v800 = vpop.f32.mrf.mxu0
    %v801 = vpop.f32.mrf.mxu0
    %v802 = vadd.f32 %v675, %v801
    %v803 = vpop.f32.mrf.mxu0
    %804 = vmatprep.mubr.bf16.mxu0 0
    %805 = vmatmul.mubr.bf16.gmra.mxu0 %v645
    %v806 = vpop.f32.mrf.mxu0
    %v807 = vadd.f32 %v675, %v806
    %v808 = vpop.f32.mrf.mxu0
    %v809 = vpop.f32.mrf.mxu0
    %v810 = vadd.f32 %v675, %v809
    %v811 = vpop.f32.mrf.mxu0
    %812 = vmatprep.mubr.bf16.mxu0 0
    %813 = vmatmul.mubr.bf16.gmra.mxu0 %v646
    %v814 = vpop.f32.mrf.mxu0
    %v815 = vadd.f32 %v675, %v814
    %v816 = vpop.f32.mrf.mxu0
    %v817 = vpop.f32.mrf.mxu0
    %v818 = vadd.f32 %v675, %v817
    %v819 = vpop.f32.mrf.mxu0
    %820 = vmatprep.mubr.bf16.mxu0 0
    %821 = vmatmul.mubr.bf16.gmra.mxu0 %v647
    %v822 = vpop.f32.mrf.mxu0
    %v823 = vadd.f32 %v675, %v822
    %v824 = vpop.f32.mrf.mxu0
    %v825 = vpop.f32.mrf.mxu0
    %v826 = vadd.f32 %v675, %v825
    %v827 = vpop.f32.mrf.mxu0
    %828 = vmatprep.mubr.bf16.mxu0 0
    %829 = vmatmul.mubr.bf16.gmra.mxu0 %v648
    %v830 = vpop.f32.mrf.mxu0
    %v831 = vadd.f32 %v675, %v830
    %v832 = vpop.f32.mrf.mxu0
    %v833 = vpop.f32.mrf.mxu0
    %v834 = vadd.f32 %v675, %v833
    %v835 = vpop.f32.mrf.mxu0
    %836 = vmatprep.mubr.bf16.mxu0 0
    %837 = vmatmul.mubr.bf16.gmra.mxu0 %v649
    %v838 = vpop.f32.mrf.mxu0
    %v839 = vadd.f32 %v675, %v838
    %v840 = vpop.f32.mrf.mxu0
    %v841 = vpop.f32.mrf.mxu0
    %v842 = vadd.f32 %v675, %v841
    %v843 = vpop.f32.mrf.mxu0
    %844 = vmatprep.mubr.bf16.mxu0 0
    %845 = vmatmul.mubr.bf16.gmra.mxu0 %v650
    %v846 = vpop.f32.mrf.mxu0
    %v847 = vadd.f32 %v675, %v846
    %v848 = vpop.f32.mrf.mxu0
    %v849 = vpop.f32.mrf.mxu0
    %v850 = vadd.f32 %v675, %v849
    %v851 = vpop.f32.mrf.mxu0
    %852 = vmatprep.mubr.bf16.mxu0 0
    %853 = vmatmul.mubr.bf16.gmra.mxu0 %v651
    %v854 = vpop.f32.mrf.mxu0
    %v855 = vadd.f32 %v675, %v854
    %v856 = vpop.f32.mrf.mxu0
    %v857 = vpop.f32.mrf.mxu0
    %v858 = vadd.f32 %v675, %v857
    %v859 = vpop.f32.mrf.mxu0
    %860 = vmatprep.mubr.bf16.mxu0 0
    %861 = vmatmul.mubr.bf16.gmra.mxu0 %v652
    %v862 = vpop.f32.mrf.mxu0
    %v863 = vadd.f32 %v675, %v862
    %v864 = vpop.f32.mrf.mxu0
    %v865 = vpop.f32.mrf.mxu0
    %v866 = vadd.f32 %v675, %v865
    %v867 = vpop.f32.mrf.mxu0
    %868 = vmatprep.mubr.bf16.mxu0 0
    %869 = vmatmul.mubr.bf16.gmra.mxu0 %v653
    %v870 = vpop.f32.mrf.mxu0
    %v871 = vadd.f32 %v675, %v870
    %v872 = vpop.f32.mrf.mxu0
    %v873 = vpop.f32.mrf.mxu0
    %v874 = vadd.f32 %v675, %v873
    %v875 = vpop.f32.mrf.mxu0
    %876 = vmatprep.mubr.bf16.mxu0 0
    %877 = vmatmul.mubr.bf16.gmra.mxu0 %v654
    %v878 = vpop.f32.mrf.mxu0
    %v879 = vadd.f32 %v675, %v878
    %v880 = vpop.f32.mrf.mxu0
    %v881 = vpop.f32.mrf.mxu0
    %v882 = vadd.f32 %v675, %v881
    %v883 = vpop.f32.mrf.mxu0
    %884 = vdwg.mxu0
    %v885 = vadd.f32 %v759, %v762
    %v886 = vadd.f32 %v885, %v767
    %v887 = vadd.f32 %v886, %v770
    %v888 = vadd.f32 %v887, %v775
    %v889 = vadd.f32 %v888, %v778
    %v890 = vadd.f32 %v889, %v783
    %v891 = vadd.f32 %v890, %v786
    %v892 = vadd.f32 %v891, %v791
    %v893 = vadd.f32 %v892, %v794
    %v894 = vadd.f32 %v893, %v799
    %v895 = vadd.f32 %v894, %v802
    %v896 = vadd.f32 %v895, %v807
    %v897 = vadd.f32 %v896, %v810
    %v898 = vadd.f32 %v897, %v815
    %v899 = vadd.f32 %v898, %v818
    %v900 = vadd.f32 %v899, %v823
    %v901 = vadd.f32 %v900, %v826
    %v902 = vadd.f32 %v901, %v831
    %v903 = vadd.f32 %v902, %v834
    %v904 = vadd.f32 %v903, %v839
    %v905 = vadd.f32 %v904, %v842
    %v906 = vadd.f32 %v905, %v847
    %v907 = vadd.f32 %v906, %v850
    %v908 = vadd.f32 %v907, %v855
    %v909 = vadd.f32 %v908, %v858
    %v910 = vadd.f32 %v909, %v863
    %v911 = vadd.f32 %v910, %v866
    %v912 = vadd.f32 %v911, %v871
    %v913 = vadd.f32 %v912, %v874
    %v914 = vadd.f32 %v913, %v879
    %v915 = vadd.f32 %v914, %v882
    %v916 = vrot.slane %v915, 4
    %v917 = vadd.f32 %v915, %v916
    %v918 = vrot.slane %v917, 2
    %v919 = vadd.f32 %v917, %v918
    %v920 = vrot.slane %v919, 1
    %v921 = vadd.f32 %v919, %v920
    %v922 = vmul.f32 %v921, 0.00390625
    %v923 = vmul.f32 %v759, %v759
    %v924 = vmul.f32 %v762, %v762
    %v925 = vmul.f32 %v767, %v767
    %v926 = vmul.f32 %v770, %v770
    %v927 = vmul.f32 %v775, %v775
    %v928 = vmul.f32 %v778, %v778
    %v929 = vmul.f32 %v783, %v783
    %v930 = vmul.f32 %v786, %v786
    %v931 = vmul.f32 %v791, %v791
    %v932 = vmul.f32 %v794, %v794
    %v933 = vmul.f32 %v799, %v799
    %v934 = vmul.f32 %v802, %v802
    %v935 = vmul.f32 %v807, %v807
    %v936 = vmul.f32 %v810, %v810
    %v937 = vmul.f32 %v815, %v815
    %v938 = vmul.f32 %v818, %v818
    %v939 = vmul.f32 %v823, %v823
    %v940 = vmul.f32 %v826, %v826
    %v941 = vmul.f32 %v831, %v831
    %v942 = vmul.f32 %v834, %v834
    %v943 = vmul.f32 %v839, %v839
    %v944 = vmul.f32 %v842, %v842
    %v945 = vmul.f32 %v847, %v847
    %v946 = vmul.f32 %v850, %v850
    %v947 = vmul.f32 %v855, %v855
    %v948 = vmul.f32 %v858, %v858
    %v949 = vmul.f32 %v863, %v863
    %v950 = vmul.f32 %v866, %v866
    %v951 = vmul.f32 %v871, %v871
    %v952 = vmul.f32 %v874, %v874
    %v953 = vmul.f32 %v879, %v879
    %v954 = vmul.f32 %v882, %v882
    %v955 = vadd.f32 %v923, %v924
    %v956 = vadd.f32 %v955, %v925
    %v957 = vadd.f32 %v956, %v926
    %v958 = vadd.f32 %v957, %v927
    %v959 = vadd.f32 %v958, %v928
    %v960 = vadd.f32 %v959, %v929
    %v961 = vadd.f32 %v960, %v930
    %v962 = vadd.f32 %v961, %v931
    %v963 = vadd.f32 %v962, %v932
    %v964 = vadd.f32 %v963, %v933
    %v965 = vadd.f32 %v964, %v934
    %v966 = vadd.f32 %v965, %v935
    %v967 = vadd.f32 %v966, %v936
    %v968 = vadd.f32 %v967, %v937
    %v969 = vadd.f32 %v968, %v938
    %v970 = vadd.f32 %v969, %v939
    %v971 = vadd.f32 %v970, %v940
    %v972 = vadd.f32 %v971, %v941
    %v973 = vadd.f32 %v972, %v942
    %v974 = vadd.f32 %v973, %v943
    %v975 = vadd.f32 %v974, %v944
    %v976 = vadd.f32 %v975, %v945
    %v977 = vadd.f32 %v976, %v946
    %v978 = vadd.f32 %v977, %v947
    %v979 = vadd.f32 %v978, %v948
    %v980 = vadd.f32 %v979, %v949
    %v981 = vadd.f32 %v980, %v950
    %v982 = vadd.f32 %v981, %v951
    %v983 = vadd.f32 %v982, %v952
    %v984 = vadd.f32 %v983, %v953
    %v985 = vadd.f32 %v984, %v954
    %v986 = vrot.slane %v985, 4
    %v987 = vadd.f32 %v985, %v986
    %v988 = vrot.slane %v987, 2
    %v989 = vadd.f32 %v987, %v988
    %v990 = vrot.slane %v989, 1
    %v991 = vadd.f32 %v989, %v990
    %v992 = vmul.f32 %v991, 0.00390625
    %v993 = vmul.f32 %v922, %v922
    %v994 = vsub.f32 %v992, %v993
    %v995 = vadd.f32 %v994, 1e-05
    %v996 = vrsqrt.pop %v995
    %v997 = vld [vmem:[%s3 + $0x1] sm:$0x1]
    %v998 = vmul.f32 %v996, %v997
    %v999 = vsub.f32 %v759, %v922
    %v1000 = vsub.f32 %v762, %v922
    %v1001 = vsub.f32 %v767, %v922
    %v1002 = vsub.f32 %v770, %v922
    %v1003 = vsub.f32 %v775, %v922
    %v1004 = vsub.f32 %v778, %v922
    %v1005 = vsub.f32 %v783, %v922
    %v1006 = vsub.f32 %v786, %v922
    %v1007 = vsub.f32 %v791, %v922
    %v1008 = vsub.f32 %v794, %v922
    %v1009 = vsub.f32 %v799, %v922
    %v1010 = vsub.f32 %v802, %v922
    %v1011 = vsub.f32 %v807, %v922
    %v1012 = vsub.f32 %v810, %v922
    %v1013 = vsub.f32 %v815, %v922
    %v1014 = vsub.f32 %v818, %v922
    %v1015 = vsub.f32 %v823, %v922
    %v1016 = vsub.f32 %v826, %v922
    %v1017 = vsub.f32 %v831, %v922
    %v1018 = vsub.f32 %v834, %v922
    %v1019 = vsub.f32 %v839, %v922
    %v1020 = vsub.f32 %v842, %v922
    %v1021 = vsub.f32 %v847, %v922
    %v1022 = vsub.f32 %v850, %v922
    %v1023 = vsub.f32 %v855, %v922
    %v1024 = vsub.f32 %v858, %v922
    %v1025 = vsub.f32 %v863, %v922
    %v1026 = vsub.f32 %v866, %v922
    %v1027 = vsub.f32 %v871, %v922
    %v1028 = vsub.f32 %v874, %v922
    %v1029 = vsub.f32 %v879, %v922
    %v1030 = vsub.f32 %v882, %v922
    %v1031 = vlaneseq
    %v1032 = vshrl.u32 %v1031, 7
    %v1033 = vsub.s32 0, %v1032
    %v1034 = vrot.slane %v998, %v1033
    %v1035 = vmul.f32 %v999, %v1034
    %v1036 = vmul.f32 %v1000, %v1034
    %v1037 = vmul.f32 %v1001, %v1034
    %v1038 = vmul.f32 %v1002, %v1034
    %v1039 = vmul.f32 %v1003, %v1034
    %v1040 = vmul.f32 %v1004, %v1034
    %v1041 = vmul.f32 %v1005, %v1034
    %v1042 = vmul.f32 %v1006, %v1034
    %v1043 = vmul.f32 %v1007, %v1034
    %v1044 = vmul.f32 %v1008, %v1034
    %v1045 = vmul.f32 %v1009, %v1034
    %v1046 = vmul.f32 %v1010, %v1034
    %v1047 = vmul.f32 %v1011, %v1034
    %v1048 = vmul.f32 %v1012, %v1034
    %v1049 = vmul.f32 %v1013, %v1034
    %v1050 = vmul.f32 %v1014, %v1034
    %v1051 = vmul.f32 %v1015, %v1034
    %v1052 = vmul.f32 %v1016, %v1034
    %v1053 = vmul.f32 %v1017, %v1034
    %v1054 = vmul.f32 %v1018, %v1034
    %v1055 = vmul.f32 %v1019, %v1034
    %v1056 = vmul.f32 %v1020, %v1034
    %v1057 = vmul.f32 %v1021, %v1034
    %v1058 = vmul.f32 %v1022, %v1034
    %v1059 = vmul.f32 %v1023, %v1034
    %v1060 = vmul.f32 %v1024, %v1034
    %v1061 = vmul.f32 %v1025, %v1034
    %v1062 = vmul.f32 %v1026, %v1034
    %v1063 = vmul.f32 %v1027, %v1034
    %v1064 = vmul.f32 %v1028, %v1034
    %v1065 = vmul.f32 %v1029, %v1034
    %v1066 = vmul.f32 %v1030, %v1034
    %v1067 = vld [vmem:[%s4 + $0x1] sm:$0x1]
    %v1068 = vlaneseq
    %v1069 = vshrl.u32 %v1068, 7
    %v1070 = vsub.s32 0, %v1069
    %v1071 = vrot.slane %v1067, %v1070
    %v1072 = vadd.f32 %v1035, %v1071
    %v1073 = vadd.f32 %v1036, %v1071
    %v1074 = vadd.f32 %v1037, %v1071
    %v1075 = vadd.f32 %v1038, %v1071
    %v1076 = vadd.f32 %v1039, %v1071
    %v1077 = vadd.f32 %v1040, %v1071
    %v1078 = vadd.f32 %v1041, %v1071
    %v1079 = vadd.f32 %v1042, %v1071
    %v1080 = vadd.f32 %v1043, %v1071
    %v1081 = vadd.f32 %v1044, %v1071
    %v1082 = vadd.f32 %v1045, %v1071
    %v1083 = vadd.f32 %v1046, %v1071
    %v1084 = vadd.f32 %v1047, %v1071
    %v1085 = vadd.f32 %v1048, %v1071
    %v1086 = vadd.f32 %v1049, %v1071
    %v1087 = vadd.f32 %v1050, %v1071
    %v1088 = vadd.f32 %v1051, %v1071
    %v1089 = vadd.f32 %v1052, %v1071
    %v1090 = vadd.f32 %v1053, %v1071
    %v1091 = vadd.f32 %v1054, %v1071
    %v1092 = vadd.f32 %v1055, %v1071
    %v1093 = vadd.f32 %v1056, %v1071
    %v1094 = vadd.f32 %v1057, %v1071
    %v1095 = vadd.f32 %v1058, %v1071
    %v1096 = vadd.f32 %v1059, %v1071
    %v1097 = vadd.f32 %v1060, %v1071
    %v1098 = vadd.f32 %v1061, %v1071
    %v1099 = vadd.f32 %v1062, %v1071
    %v1100 = vadd.f32 %v1063, %v1071
    %v1101 = vadd.f32 %v1064, %v1071
    %v1102 = vadd.f32 %v1065, %v1071
    %v1103 = vadd.f32 %v1066, %v1071
    %v1104 = vmax.f32 %v1072, 0.0
    %v1105 = vmax.f32 %v1073, 0.0
    %v1106 = vmax.f32 %v1074, 0.0
    %v1107 = vmax.f32 %v1075, 0.0
    %v1108 = vmax.f32 %v1076, 0.0
    %v1109 = vmax.f32 %v1077, 0.0
    %v1110 = vmax.f32 %v1078, 0.0
    %v1111 = vmax.f32 %v1079, 0.0
    %v1112 = vmax.f32 %v1080, 0.0
    %v1113 = vmax.f32 %v1081, 0.0
    %v1114 = vmax.f32 %v1082, 0.0
    %v1115 = vmax.f32 %v1083, 0.0
    %v1116 = vmax.f32 %v1084, 0.0
    %v1117 = vmax.f32 %v1085, 0.0
    %v1118 = vmax.f32 %v1086, 0.0
    %v1119 = vmax.f32 %v1087, 0.0
    %v1120 = vmax.f32 %v1088, 0.0
    %v1121 = vmax.f32 %v1089, 0.0
    %v1122 = vmax.f32 %v1090, 0.0
    %v1123 = vmax.f32 %v1091, 0.0
    %v1124 = vmax.f32 %v1092, 0.0
    %v1125 = vmax.f32 %v1093, 0.0
    %v1126 = vmax.f32 %v1094, 0.0
    %v1127 = vmax.f32 %v1095, 0.0
    %v1128 = vmax.f32 %v1096, 0.0
    %v1129 = vmax.f32 %v1097, 0.0
    %v1130 = vmax.f32 %v1098, 0.0
    %v1131 = vmax.f32 %v1099, 0.0
    %v1132 = vmax.f32 %v1100, 0.0
    %v1133 = vmax.f32 %v1101, 0.0
    %v1134 = vmax.f32 %v1102, 0.0
    %v1135 = vmax.f32 %v1103, 0.0
    %v1136 = vpack.c.bf16 %v1105, %v1104
    %v1137 = vpack.c.bf16 %v1107, %v1106
    %v1138 = vpack.c.bf16 %v1109, %v1108
    %v1139 = vpack.c.bf16 %v1111, %v1110
    %v1140 = vpack.c.bf16 %v1113, %v1112
    %v1141 = vpack.c.bf16 %v1115, %v1114
    %v1142 = vpack.c.bf16 %v1117, %v1116
    %v1143 = vpack.c.bf16 %v1119, %v1118
    %v1144 = vpack.c.bf16 %v1121, %v1120
    %v1145 = vpack.c.bf16 %v1123, %v1122
    %v1146 = vpack.c.bf16 %v1125, %v1124
    %v1147 = vpack.c.bf16 %v1127, %v1126
    %v1148 = vpack.c.bf16 %v1129, %v1128
    %v1149 = vpack.c.bf16 %v1131, %v1130
    %v1150 = vpack.c.bf16 %v1133, %v1132
    %v1151 = vpack.c.bf16 %v1135, %v1134
    %s1152 = scalar_lea.vmem %s5, 64
    %v1153 = vld [vmem:[%s1152] sm:$0xf]
    %v1154 = vld [vmem:[%s1152 + $0x4] sm:$0xf]
    %v1155 = vld [vmem:[%s1152 + $0x8] sm:$0xf]
    %v1156 = vld [vmem:[%s1152 + $0xc] sm:$0xf]
    %v1157 = vld [vmem:[%s1152 + $0x10] sm:$0xf]
    %v1158 = vld [vmem:[%s1152 + $0x14] sm:$0xf]
    %v1159 = vld [vmem:[%s1152 + $0x18] sm:$0xf]
    %v1160 = vld [vmem:[%s1152 + $0x1c] sm:$0xf]
    %v1161 = vld [vmem:[%s1152 + $0x20] sm:$0xf]
    %v1162 = vld [vmem:[%s1152 + $0x24] sm:$0xf]
    %v1163 = vld [vmem:[%s1152 + $0x28] sm:$0xf]
    %v1164 = vld [vmem:[%s1152 + $0x2c] sm:$0xf]
    %v1165 = vld [vmem:[%s1152 + $0x30] sm:$0xf]
    %v1166 = vld [vmem:[%s1152 + $0x34] sm:$0xf]
    %v1167 = vld [vmem:[%s1152 + $0x38] sm:$0xf]
    %v1168 = vld [vmem:[%s1152 + $0x3c] sm:$0xf]
    %v1169 = vld [vmem:[%s6 + $0x1] sm:$0x1]
    %v1170 = vlaneseq
    %v1171 = vshrl.u32 %v1170, 7
    %v1172 = vsub.s32 0, %v1171
    %v1173 = vrot.slane %v1169, %v1172
    %v1190 = vunpack.c.l.b16 %v1153
    %v1191 = vunpack.c.l.b16 %v1154
    %v1192 = vunpack.c.l.b16 %v1155
    %v1193 = vunpack.c.l.b16 %v1156
    %v1194 = vunpack.c.l.b16 %v1157
    %v1195 = vunpack.c.l.b16 %v1158
    %v1196 = vunpack.c.l.b16 %v1159
    %v1197 = vunpack.c.l.b16 %v1160
    %v1198 = vunpack.c.l.b16 %v1161
    %v1199 = vunpack.c.l.b16 %v1162
    %v1200 = vunpack.c.l.b16 %v1163
    %v1201 = vunpack.c.l.b16 %v1164
    %v1202 = vunpack.c.l.b16 %v1165
    %v1203 = vunpack.c.l.b16 %v1166
    %v1204 = vunpack.c.l.b16 %v1167
    %v1205 = vunpack.c.l.b16 %v1168
    %v1206 = vpack.c.b16 %v1191, %v1190
    %v1207 = vpack.c.b16 %v1193, %v1192
    %v1208 = vpack.c.b16 %v1195, %v1194
    %v1209 = vpack.c.b16 %v1197, %v1196
    %v1210 = vpack.c.b16 %v1199, %v1198
    %v1211 = vpack.c.b16 %v1201, %v1200
    %v1212 = vpack.c.b16 %v1203, %v1202
    %v1213 = vpack.c.b16 %v1205, %v1204
    %1222 = vmatprep.subr.bf16.mxu0 0
    %1223 = vmatpush1.bf16.msra.mxu0 %v1213
    %1224 = vmatprep.subr.bf16.mxu0 0
    %1225 = vmatpush1.bf16.msra.mxu0 %v1212
    %1226 = vmatprep.subr.bf16.mxu0 0
    %1227 = vmatpush1.bf16.msra.mxu0 %v1211
    %1228 = vmatprep.subr.bf16.mxu0 0
    %1229 = vmatpush1.bf16.msra.mxu0 %v1210
    %1230 = vmatprep.subr.bf16.mxu0 0
    %1231 = vmatpush1.bf16.msra.mxu0 %v1209
    %1232 = vmatprep.subr.bf16.mxu0 0
    %1233 = vmatpush1.bf16.msra.mxu0 %v1208
    %1234 = vmatprep.subr.bf16.mxu0 0
    %1235 = vmatpush1.bf16.msra.mxu0 %v1207
    %1236 = vmatprep.subr.bf16.mxu0 0
    %1237 = vmatpush1.bf16.msra.mxu0 %v1206
    %1238 = vmatprep.subr.bf16.mxu0 0
    %1239 = vmatpush2.bf16.msra.mxu0 0
    %1240 = vmatprep.subr.bf16.mxu0 0
    %1241 = vmatpush2.bf16.msra.mxu0 0
    %1242 = vmatprep.subr.bf16.mxu0 0
    %1243 = vmatpush2.bf16.msra.mxu0 0
    %1244 = vmatprep.subr.bf16.mxu0 0
    %1245 = vmatpush2.bf16.msra.mxu0 0
    %1246 = vmatprep.subr.bf16.mxu0 0
    %1247 = vmatpush2.bf16.msra.mxu0 0
    %1248 = vmatprep.subr.bf16.mxu0 0
    %1249 = vmatpush2.bf16.msra.mxu0 0
    %1250 = vmatprep.subr.bf16.mxu0 0
    %1251 = vmatpush2.bf16.msra.mxu0 0
    %1252 = vmatprep.subr.bf16.mxu0 0
    %1253 = vmatpush2.bf16.msra.mxu0 0
    %1254 = vmatprep.mubr.bf16.mxu0 0
    %1255 = vmatmul.mubr.bf16.gmra.mxu0 %v1136
    %v1256 = vpop.f32.mrf.mxu0
    %v1257 = vadd.f32 %v1173, %v1256
    %v1258 = vpop.f32.mrf.mxu0
    %v1259 = vpop.f32.mrf.mxu0
    %v1260 = vadd.f32 %v1173, %v1259
    %v1261 = vpop.f32.mrf.mxu0
    %1262 = vmatprep.mubr.bf16.mxu0 0
    %1263 = vmatmul.mubr.bf16.gmra.mxu0 %v1137
    %v1264 = vpop.f32.mrf.mxu0
    %v1265 = vadd.f32 %v1173, %v1264
    %v1266 = vpop.f32.mrf.mxu0
    %v1267 = vpop.f32.mrf.mxu0
    %v1268 = vadd.f32 %v1173, %v1267
    %v1269 = vpop.f32.mrf.mxu0
    %1270 = vmatprep.mubr.bf16.mxu0 0
    %1271 = vmatmul.mubr.bf16.gmra.mxu0 %v1138
    %v1272 = vpop.f32.mrf.mxu0
    %v1273 = vadd.f32 %v1173, %v1272
    %v1274 = vpop.f32.mrf.mxu0
    %v1275 = vpop.f32.mrf.mxu0
    %v1276 = vadd.f32 %v1173, %v1275
    %v1277 = vpop.f32.mrf.mxu0
    %1278 = vmatprep.mubr.bf16.mxu0 0
    %1279 = vmatmul.mubr.bf16.gmra.mxu0 %v1139
    %v1280 = vpop.f32.mrf.mxu0
    %v1281 = vadd.f32 %v1173, %v1280
    %v1282 = vpop.f32.mrf.mxu0
    %v1283 = vpop.f32.mrf.mxu0
    %v1284 = vadd.f32 %v1173, %v1283
    %v1285 = vpop.f32.mrf.mxu0
    %1286 = vmatprep.mubr.bf16.mxu0 0
    %1287 = vmatmul.mubr.bf16.gmra.mxu0 %v1140
    %v1288 = vpop.f32.mrf.mxu0
    %v1289 = vadd.f32 %v1173, %v1288
    %v1290 = vpop.f32.mrf.mxu0
    %v1291 = vpop.f32.mrf.mxu0
    %v1292 = vadd.f32 %v1173, %v1291
    %v1293 = vpop.f32.mrf.mxu0
    %1294 = vmatprep.mubr.bf16.mxu0 0
    %1295 = vmatmul.mubr.bf16.gmra.mxu0 %v1141
    %v1296 = vpop.f32.mrf.mxu0
    %v1297 = vadd.f32 %v1173, %v1296
    %v1298 = vpop.f32.mrf.mxu0
    %v1299 = vpop.f32.mrf.mxu0
    %v1300 = vadd.f32 %v1173, %v1299
    %v1301 = vpop.f32.mrf.mxu0
    %1302 = vmatprep.mubr.bf16.mxu0 0
    %1303 = vmatmul.mubr.bf16.gmra.mxu0 %v1142
    %v1304 = vpop.f32.mrf.mxu0
    %v1305 = vadd.f32 %v1173, %v1304
    %v1306 = vpop.f32.mrf.mxu0
    %v1307 = vpop.f32.mrf.mxu0
    %v1308 = vadd.f32 %v1173, %v1307
    %v1309 = vpop.f32.mrf.mxu0
    %1310 = vmatprep.mubr.bf16.mxu0 0
    %1311 = vmatmul.mubr.bf16.gmra.mxu0 %v1143
    %v1312 = vpop.f32.mrf.mxu0
    %v1313 = vadd.f32 %v1173, %v1312
    %v1314 = vpop.f32.mrf.mxu0
    %v1315 = vpop.f32.mrf.mxu0
    %v1316 = vadd.f32 %v1173, %v1315
    %v1317 = vpop.f32.mrf.mxu0
    %1318 = vmatprep.mubr.bf16.mxu0 0
    %1319 = vmatmul.mubr.bf16.gmra.mxu0 %v1144
    %v1320 = vpop.f32.mrf.mxu0
    %v1321 = vadd.f32 %v1173, %v1320
    %v1322 = vpop.f32.mrf.mxu0
    %v1323 = vpop.f32.mrf.mxu0
    %v1324 = vadd.f32 %v1173, %v1323
    %v1325 = vpop.f32.mrf.mxu0
    %1326 = vmatprep.mubr.bf16.mxu0 0
    %1327 = vmatmul.mubr.bf16.gmra.mxu0 %v1145
    %v1328 = vpop.f32.mrf.mxu0
    %v1329 = vadd.f32 %v1173, %v1328
    %v1330 = vpop.f32.mrf.mxu0
    %v1331 = vpop.f32.mrf.mxu0
    %v1332 = vadd.f32 %v1173, %v1331
    %v1333 = vpop.f32.mrf.mxu0
    %1334 = vmatprep.mubr.bf16.mxu0 0
    %1335 = vmatmul.mubr.bf16.gmra.mxu0 %v1146
    %v1336 = vpop.f32.mrf.mxu0
    %v1337 = vadd.f32 %v1173, %v1336
    %v1338 = vpop.f32.mrf.mxu0
    %v1339 = vpop.f32.mrf.mxu0
    %v1340 = vadd.f32 %v1173, %v1339
    %v1341 = vpop.f32.mrf.mxu0
    %1342 = vmatprep.mubr.bf16.mxu0 0
    %1343 = vmatmul.mubr.bf16.gmra.mxu0 %v1147
    %v1344 = vpop.f32.mrf.mxu0
    %v1345 = vadd.f32 %v1173, %v1344
    %v1346 = vpop.f32.mrf.mxu0
    %v1347 = vpop.f32.mrf.mxu0
    %v1348 = vadd.f32 %v1173, %v1347
    %v1349 = vpop.f32.mrf.mxu0
    %1350 = vmatprep.mubr.bf16.mxu0 0
    %1351 = vmatmul.mubr.bf16.gmra.mxu0 %v1148
    %v1352 = vpop.f32.mrf.mxu0
    %v1353 = vadd.f32 %v1173, %v1352
    %v1354 = vpop.f32.mrf.mxu0
    %v1355 = vpop.f32.mrf.mxu0
    %v1356 = vadd.f32 %v1173, %v1355
    %v1357 = vpop.f32.mrf.mxu0
    %1358 = vmatprep.mubr.bf16.mxu0 0
    %1359 = vmatmul.mubr.bf16.gmra.mxu0 %v1149
    %v1360 = vpop.f32.mrf.mxu0
    %v1361 = vadd.f32 %v1173, %v1360
    %v1362 = vpop.f32.mrf.mxu0
    %v1363 = vpop.f32.mrf.mxu0
    %v1364 = vadd.f32 %v1173, %v1363
    %v1365 = vpop.f32.mrf.mxu0
    %1366 = vmatprep.mubr.bf16.mxu0 0
    %1367 = vmatmul.mubr.bf16.gmra.mxu0 %v1150
    %v1368 = vpop.f32.mrf.mxu0
    %v1369 = vadd.f32 %v1173, %v1368
    %v1370 = vpop.f32.mrf.mxu0
    %v1371 = vpop.f32.mrf.mxu0
    %v1372 = vadd.f32 %v1173, %v1371
    %v1373 = vpop.f32.mrf.mxu0
    %1374 = vmatprep.mubr.bf16.mxu0 0
    %1375 = vmatmul.mubr.bf16.gmra.mxu0 %v1151
    %v1376 = vpop.f32.mrf.mxu0
    %v1377 = vadd.f32 %v1173, %v1376
    %v1378 = vpop.f32.mrf.mxu0
    %v1379 = vpop.f32.mrf.mxu0
    %v1380 = vadd.f32 %v1173, %v1379
    %v1381 = vpop.f32.mrf.mxu0
    %1382 = vdwg.mxu0
    %v1383 = vadd.f32 %v262, %v1257
    %v1384 = vadd.f32 %v265, %v1260
    %v1385 = vadd.f32 %v270, %v1265
    %v1386 = vadd.f32 %v273, %v1268
    %v1387 = vadd.f32 %v278, %v1273
    %v1388 = vadd.f32 %v281, %v1276
    %v1389 = vadd.f32 %v286, %v1281
    %v1390 = vadd.f32 %v289, %v1284
    %v1391 = vadd.f32 %v294, %v1289
    %v1392 = vadd.f32 %v297, %v1292
    %v1393 = vadd.f32 %v302, %v1297
    %v1394 = vadd.f32 %v305, %v1300
    %v1395 = vadd.f32 %v310, %v1305
    %v1396 = vadd.f32 %v313, %v1308
    %v1397 = vadd.f32 %v318, %v1313
    %v1398 = vadd.f32 %v321, %v1316
    %v1399 = vadd.f32 %v326, %v1321
    %v1400 = vadd.f32 %v329, %v1324
    %v1401 = vadd.f32 %v334, %v1329
    %v1402 = vadd.f32 %v337, %v1332
    %v1403 = vadd.f32 %v342, %v1337
    %v1404 = vadd.f32 %v345, %v1340
    %v1405 = vadd.f32 %v350, %v1345
    %v1406 = vadd.f32 %v353, %v1348
    %v1407 = vadd.f32 %v358, %v1353
    %v1408 = vadd.f32 %v361, %v1356
    %v1409 = vadd.f32 %v366, %v1361
    %v1410 = vadd.f32 %v369, %v1364
    %v1411 = vadd.f32 %v374, %v1369
    %v1412 = vadd.f32 %v377, %v1372
    %v1413 = vadd.f32 %v382, %v1377
    %v1414 = vadd.f32 %v385, %v1380
    %v1415 = vmul.f32 %v1383, 0.5
    %v1416 = vmul.f32 %v1384, 0.5
    %v1417 = vmul.f32 %v1385, 0.5
    %v1418 = vmul.f32 %v1386, 0.5
    %v1419 = vmul.f32 %v1387, 0.5
    %v1420 = vmul.f32 %v1388, 0.5
    %v1421 = vmul.f32 %v1389, 0.5
    %v1422 = vmul.f32 %v1390, 0.5
    %v1423 = vmul.f32 %v1391, 0.5
    %v1424 = vmul.f32 %v1392, 0.5
    %v1425 = vmul.f32 %v1393, 0.5
    %v1426 = vmul.f32 %v1394, 0.5
    %v1427 = vmul.f32 %v1395, 0.5
    %v1428 = vmul.f32 %v1396, 0.5
    %v1429 = vmul.f32 %v1397, 0.5
    %v1430 = vmul.f32 %v1398, 0.5
    %v1431 = vmul.f32 %v1399, 0.5
    %v1432 = vmul.f32 %v1400, 0.5
    %v1433 = vmul.f32 %v1401, 0.5
    %v1434 = vmul.f32 %v1402, 0.5
    %v1435 = vmul.f32 %v1403, 0.5
    %v1436 = vmul.f32 %v1404, 0.5
    %v1437 = vmul.f32 %v1405, 0.5
    %v1438 = vmul.f32 %v1406, 0.5
    %v1439 = vmul.f32 %v1407, 0.5
    %v1440 = vmul.f32 %v1408, 0.5
    %v1441 = vmul.f32 %v1409, 0.5
    %v1442 = vmul.f32 %v1410, 0.5
    %v1443 = vmul.f32 %v1411, 0.5
    %v1444 = vmul.f32 %v1412, 0.5
    %v1445 = vmul.f32 %v1413, 0.5
    %v1446 = vmul.f32 %v1414, 0.5
    %v1447 = vadd.f32 %v1415, %v1416
    %v1448 = vadd.f32 %v1447, %v1417
    %v1449 = vadd.f32 %v1448, %v1418
    %v1450 = vadd.f32 %v1449, %v1419
    %v1451 = vadd.f32 %v1450, %v1420
    %v1452 = vadd.f32 %v1451, %v1421
    %v1453 = vadd.f32 %v1452, %v1422
    %v1454 = vadd.f32 %v1453, %v1423
    %v1455 = vadd.f32 %v1454, %v1424
    %v1456 = vadd.f32 %v1455, %v1425
    %v1457 = vadd.f32 %v1456, %v1426
    %v1458 = vadd.f32 %v1457, %v1427
    %v1459 = vadd.f32 %v1458, %v1428
    %v1460 = vadd.f32 %v1459, %v1429
    %v1461 = vadd.f32 %v1460, %v1430
    %v1462 = vadd.f32 %v1461, %v1431
    %v1463 = vadd.f32 %v1462, %v1432
    %v1464 = vadd.f32 %v1463, %v1433
    %v1465 = vadd.f32 %v1464, %v1434
    %v1466 = vadd.f32 %v1465, %v1435
    %v1467 = vadd.f32 %v1466, %v1436
    %v1468 = vadd.f32 %v1467, %v1437
    %v1469 = vadd.f32 %v1468, %v1438
    %v1470 = vadd.f32 %v1469, %v1439
    %v1471 = vadd.f32 %v1470, %v1440
    %v1472 = vadd.f32 %v1471, %v1441
    %v1473 = vadd.f32 %v1472, %v1442
    %v1474 = vadd.f32 %v1473, %v1443
    %v1475 = vadd.f32 %v1474, %v1444
    %v1476 = vadd.f32 %v1475, %v1445
    %v1477 = vadd.f32 %v1476, %v1446
    %v1478 = vrot.slane %v1477, 4
    %v1479 = vadd.f32 %v1477, %v1478
    %v1480 = vrot.slane %v1479, 2
    %v1481 = vadd.f32 %v1479, %v1480
    %v1482 = vrot.slane %v1481, 1
    %v1483 = vadd.f32 %v1481, %v1482
    %v1484 = vmul.f32 %v1483, 0.00390625
    %v1485 = vmul.f32 %v1415, %v1415
    %v1486 = vmul.f32 %v1416, %v1416
    %v1487 = vmul.f32 %v1417, %v1417
    %v1488 = vmul.f32 %v1418, %v1418
    %v1489 = vmul.f32 %v1419, %v1419
    %v1490 = vmul.f32 %v1420, %v1420
    %v1491 = vmul.f32 %v1421, %v1421
    %v1492 = vmul.f32 %v1422, %v1422
    %v1493 = vmul.f32 %v1423, %v1423
    %v1494 = vmul.f32 %v1424, %v1424
    %v1495 = vmul.f32 %v1425, %v1425
    %v1496 = vmul.f32 %v1426, %v1426
    %v1497 = vmul.f32 %v1427, %v1427
    %v1498 = vmul.f32 %v1428, %v1428
    %v1499 = vmul.f32 %v1429, %v1429
    %v1500 = vmul.f32 %v1430, %v1430
    %v1501 = vmul.f32 %v1431, %v1431
    %v1502 = vmul.f32 %v1432, %v1432
    %v1503 = vmul.f32 %v1433, %v1433
    %v1504 = vmul.f32 %v1434, %v1434
    %v1505 = vmul.f32 %v1435, %v1435
    %v1506 = vmul.f32 %v1436, %v1436
    %v1507 = vmul.f32 %v1437, %v1437
    %v1508 = vmul.f32 %v1438, %v1438
    %v1509 = vmul.f32 %v1439, %v1439
    %v1510 = vmul.f32 %v1440, %v1440
    %v1511 = vmul.f32 %v1441, %v1441
    %v1512 = vmul.f32 %v1442, %v1442
    %v1513 = vmul.f32 %v1443, %v1443
    %v1514 = vmul.f32 %v1444, %v1444
    %v1515 = vmul.f32 %v1445, %v1445
    %v1516 = vmul.f32 %v1446, %v1446
    %v1517 = vadd.f32 %v1485, %v1486
    %v1518 = vadd.f32 %v1517, %v1487
    %v1519 = vadd.f32 %v1518, %v1488
    %v1520 = vadd.f32 %v1519, %v1489
    %v1521 = vadd.f32 %v1520, %v1490
    %v1522 = vadd.f32 %v1521, %v1491
    %v1523 = vadd.f32 %v1522, %v1492
    %v1524 = vadd.f32 %v1523, %v1493
    %v1525 = vadd.f32 %v1524, %v1494
    %v1526 = vadd.f32 %v1525, %v1495
    %v1527 = vadd.f32 %v1526, %v1496
    %v1528 = vadd.f32 %v1527, %v1497
    %v1529 = vadd.f32 %v1528, %v1498
    %v1530 = vadd.f32 %v1529, %v1499
    %v1531 = vadd.f32 %v1530, %v1500
    %v1532 = vadd.f32 %v1531, %v1501
    %v1533 = vadd.f32 %v1532, %v1502
    %v1534 = vadd.f32 %v1533, %v1503
    %v1535 = vadd.f32 %v1534, %v1504
    %v1536 = vadd.f32 %v1535, %v1505
    %v1537 = vadd.f32 %v1536, %v1506
    %v1538 = vadd.f32 %v1537, %v1507
    %v1539 = vadd.f32 %v1538, %v1508
    %v1540 = vadd.f32 %v1539, %v1509
    %v1541 = vadd.f32 %v1540, %v1510
    %v1542 = vadd.f32 %v1541, %v1511
    %v1543 = vadd.f32 %v1542, %v1512
    %v1544 = vadd.f32 %v1543, %v1513
    %v1545 = vadd.f32 %v1544, %v1514
    %v1546 = vadd.f32 %v1545, %v1515
    %v1547 = vadd.f32 %v1546, %v1516
    %v1548 = vrot.slane %v1547, 4
    %v1549 = vadd.f32 %v1547, %v1548
    %v1550 = vrot.slane %v1549, 2
    %v1551 = vadd.f32 %v1549, %v1550
    %v1552 = vrot.slane %v1551, 1
    %v1553 = vadd.f32 %v1551, %v1552
    %v1554 = vmul.f32 %v1553, 0.00390625
    %v1555 = vmul.f32 %v1484, %v1484
    %v1556 = vsub.f32 %v1554, %v1555
    %v1557 = vadd.f32 %v1556, 1e-05
    %v1558 = vrsqrt.pop %v1557
    %v1559 = vld [vmem:[%s3 + $0x2] sm:$0x1]
    %v1560 = vmul.f32 %v1558, %v1559
    %v1561 = vsub.f32 %v1415, %v1484
    %v1562 = vsub.f32 %v1416, %v1484
    %v1563 = vsub.f32 %v1417, %v1484
    %v1564 = vsub.f32 %v1418, %v1484
    %v1565 = vsub.f32 %v1419, %v1484
    %v1566 = vsub.f32 %v1420, %v1484
    %v1567 = vsub.f32 %v1421, %v1484
    %v1568 = vsub.f32 %v1422, %v1484
    %v1569 = vsub.f32 %v1423, %v1484
    %v1570 = vsub.f32 %v1424, %v1484
    %v1571 = vsub.f32 %v1425, %v1484
    %v1572 = vsub.f32 %v1426, %v1484
    %v1573 = vsub.f32 %v1427, %v1484
    %v1574 = vsub.f32 %v1428, %v1484
    %v1575 = vsub.f32 %v1429, %v1484
    %v1576 = vsub.f32 %v1430, %v1484
    %v1577 = vsub.f32 %v1431, %v1484
    %v1578 = vsub.f32 %v1432, %v1484
    %v1579 = vsub.f32 %v1433, %v1484
    %v1580 = vsub.f32 %v1434, %v1484
    %v1581 = vsub.f32 %v1435, %v1484
    %v1582 = vsub.f32 %v1436, %v1484
    %v1583 = vsub.f32 %v1437, %v1484
    %v1584 = vsub.f32 %v1438, %v1484
    %v1585 = vsub.f32 %v1439, %v1484
    %v1586 = vsub.f32 %v1440, %v1484
    %v1587 = vsub.f32 %v1441, %v1484
    %v1588 = vsub.f32 %v1442, %v1484
    %v1589 = vsub.f32 %v1443, %v1484
    %v1590 = vsub.f32 %v1444, %v1484
    %v1591 = vsub.f32 %v1445, %v1484
    %v1592 = vsub.f32 %v1446, %v1484
    %v1593 = vlaneseq
    %v1594 = vshrl.u32 %v1593, 7
    %v1595 = vsub.s32 0, %v1594
    %v1596 = vrot.slane %v1560, %v1595
    %v1597 = vmul.f32 %v1561, %v1596
    %v1598 = vmul.f32 %v1562, %v1596
    %v1599 = vmul.f32 %v1563, %v1596
    %v1600 = vmul.f32 %v1564, %v1596
    %v1601 = vmul.f32 %v1565, %v1596
    %v1602 = vmul.f32 %v1566, %v1596
    %v1603 = vmul.f32 %v1567, %v1596
    %v1604 = vmul.f32 %v1568, %v1596
    %v1605 = vmul.f32 %v1569, %v1596
    %v1606 = vmul.f32 %v1570, %v1596
    %v1607 = vmul.f32 %v1571, %v1596
    %v1608 = vmul.f32 %v1572, %v1596
    %v1609 = vmul.f32 %v1573, %v1596
    %v1610 = vmul.f32 %v1574, %v1596
    %v1611 = vmul.f32 %v1575, %v1596
    %v1612 = vmul.f32 %v1576, %v1596
    %v1613 = vmul.f32 %v1577, %v1596
    %v1614 = vmul.f32 %v1578, %v1596
    %v1615 = vmul.f32 %v1579, %v1596
    %v1616 = vmul.f32 %v1580, %v1596
    %v1617 = vmul.f32 %v1581, %v1596
    %v1618 = vmul.f32 %v1582, %v1596
    %v1619 = vmul.f32 %v1583, %v1596
    %v1620 = vmul.f32 %v1584, %v1596
    %v1621 = vmul.f32 %v1585, %v1596
    %v1622 = vmul.f32 %v1586, %v1596
    %v1623 = vmul.f32 %v1587, %v1596
    %v1624 = vmul.f32 %v1588, %v1596
    %v1625 = vmul.f32 %v1589, %v1596
    %v1626 = vmul.f32 %v1590, %v1596
    %v1627 = vmul.f32 %v1591, %v1596
    %v1628 = vmul.f32 %v1592, %v1596
    %v1629 = vld [vmem:[%s4 + $0x2] sm:$0x1]
    %v1630 = vlaneseq
    %v1631 = vshrl.u32 %v1630, 7
    %v1632 = vsub.s32 0, %v1631
    %v1633 = vrot.slane %v1629, %v1632
    %v1634 = vadd.f32 %v1597, %v1633
    %v1635 = vadd.f32 %v1598, %v1633
    %v1636 = vadd.f32 %v1599, %v1633
    %v1637 = vadd.f32 %v1600, %v1633
    %v1638 = vadd.f32 %v1601, %v1633
    %v1639 = vadd.f32 %v1602, %v1633
    %v1640 = vadd.f32 %v1603, %v1633
    %v1641 = vadd.f32 %v1604, %v1633
    %v1642 = vadd.f32 %v1605, %v1633
    %v1643 = vadd.f32 %v1606, %v1633
    %v1644 = vadd.f32 %v1607, %v1633
    %v1645 = vadd.f32 %v1608, %v1633
    %v1646 = vadd.f32 %v1609, %v1633
    %v1647 = vadd.f32 %v1610, %v1633
    %v1648 = vadd.f32 %v1611, %v1633
    %v1649 = vadd.f32 %v1612, %v1633
    %v1650 = vadd.f32 %v1613, %v1633
    %v1651 = vadd.f32 %v1614, %v1633
    %v1652 = vadd.f32 %v1615, %v1633
    %v1653 = vadd.f32 %v1616, %v1633
    %v1654 = vadd.f32 %v1617, %v1633
    %v1655 = vadd.f32 %v1618, %v1633
    %v1656 = vadd.f32 %v1619, %v1633
    %v1657 = vadd.f32 %v1620, %v1633
    %v1658 = vadd.f32 %v1621, %v1633
    %v1659 = vadd.f32 %v1622, %v1633
    %v1660 = vadd.f32 %v1623, %v1633
    %v1661 = vadd.f32 %v1624, %v1633
    %v1662 = vadd.f32 %v1625, %v1633
    %v1663 = vadd.f32 %v1626, %v1633
    %v1664 = vadd.f32 %v1627, %v1633
    %v1665 = vadd.f32 %v1628, %v1633
    %v1666 = vmax.f32 %v1634, 0.0
    %v1667 = vmax.f32 %v1635, 0.0
    %v1668 = vmax.f32 %v1636, 0.0
    %v1669 = vmax.f32 %v1637, 0.0
    %v1670 = vmax.f32 %v1638, 0.0
    %v1671 = vmax.f32 %v1639, 0.0
    %v1672 = vmax.f32 %v1640, 0.0
    %v1673 = vmax.f32 %v1641, 0.0
    %v1674 = vmax.f32 %v1642, 0.0
    %v1675 = vmax.f32 %v1643, 0.0
    %v1676 = vmax.f32 %v1644, 0.0
    %v1677 = vmax.f32 %v1645, 0.0
    %v1678 = vmax.f32 %v1646, 0.0
    %v1679 = vmax.f32 %v1647, 0.0
    %v1680 = vmax.f32 %v1648, 0.0
    %v1681 = vmax.f32 %v1649, 0.0
    %v1682 = vmax.f32 %v1650, 0.0
    %v1683 = vmax.f32 %v1651, 0.0
    %v1684 = vmax.f32 %v1652, 0.0
    %v1685 = vmax.f32 %v1653, 0.0
    %v1686 = vmax.f32 %v1654, 0.0
    %v1687 = vmax.f32 %v1655, 0.0
    %v1688 = vmax.f32 %v1656, 0.0
    %v1689 = vmax.f32 %v1657, 0.0
    %v1690 = vmax.f32 %v1658, 0.0
    %v1691 = vmax.f32 %v1659, 0.0
    %v1692 = vmax.f32 %v1660, 0.0
    %v1693 = vmax.f32 %v1661, 0.0
    %v1694 = vmax.f32 %v1662, 0.0
    %v1695 = vmax.f32 %v1663, 0.0
    %v1696 = vmax.f32 %v1664, 0.0
    %v1697 = vmax.f32 %v1665, 0.0
    %v1698 = vpack.c.bf16 %v1667, %v1666
    %v1699 = vpack.c.bf16 %v1669, %v1668
    %v1700 = vpack.c.bf16 %v1671, %v1670
    %v1701 = vpack.c.bf16 %v1673, %v1672
    %v1702 = vpack.c.bf16 %v1675, %v1674
    %v1703 = vpack.c.bf16 %v1677, %v1676
    %v1704 = vpack.c.bf16 %v1679, %v1678
    %v1705 = vpack.c.bf16 %v1681, %v1680
    %v1706 = vpack.c.bf16 %v1683, %v1682
    %v1707 = vpack.c.bf16 %v1685, %v1684
    %v1708 = vpack.c.bf16 %v1687, %v1686
    %v1709 = vpack.c.bf16 %v1689, %v1688
    %v1710 = vpack.c.bf16 %v1691, %v1690
    %v1711 = vpack.c.bf16 %v1693, %v1692
    %v1712 = vpack.c.bf16 %v1695, %v1694
    %v1713 = vpack.c.bf16 %v1697, %v1696
    %s1714 = scalar_lea.vmem %s5, 128
    %v1715 = vld [vmem:[%s1714] sm:$0xf]
    %v1716 = vld [vmem:[%s1714 + $0x4] sm:$0xf]
    %v1717 = vld [vmem:[%s1714 + $0x8] sm:$0xf]
    %v1718 = vld [vmem:[%s1714 + $0xc] sm:$0xf]
    %v1719 = vld [vmem:[%s1714 + $0x10] sm:$0xf]
    %v1720 = vld [vmem:[%s1714 + $0x14] sm:$0xf]
    %v1721 = vld [vmem:[%s1714 + $0x18] sm:$0xf]
    %v1722 = vld [vmem:[%s1714 + $0x1c] sm:$0xf]
    %v1723 = vld [vmem:[%s1714 + $0x20] sm:$0xf]
    %v1724 = vld [vmem:[%s1714 + $0x24] sm:$0xf]
    %v1725 = vld [vmem:[%s1714 + $0x28] sm:$0xf]
    %v1726 = vld [vmem:[%s1714 + $0x2c] sm:$0xf]
    %v1727 = vld [vmem:[%s1714 + $0x30] sm:$0xf]
    %v1728 = vld [vmem:[%s1714 + $0x34] sm:$0xf]
    %v1729 = vld [vmem:[%s1714 + $0x38] sm:$0xf]
    %v1730 = vld [vmem:[%s1714 + $0x3c] sm:$0xf]
    %v1731 = vld [vmem:[%s6 + $0x2] sm:$0x1]
    %v1732 = vlaneseq
    %v1733 = vshrl.u32 %v1732, 7
    %v1734 = vsub.s32 0, %v1733
    %v1735 = vrot.slane %v1731, %v1734
    %v1752 = vunpack.c.l.b16 %v1715
    %v1753 = vunpack.c.l.b16 %v1716
    %v1754 = vunpack.c.l.b16 %v1717
    %v1755 = vunpack.c.l.b16 %v1718
    %v1756 = vunpack.c.l.b16 %v1719
    %v1757 = vunpack.c.l.b16 %v1720
    %v1758 = vunpack.c.l.b16 %v1721
    %v1759 = vunpack.c.l.b16 %v1722
    %v1760 = vunpack.c.l.b16 %v1723
    %v1761 = vunpack.c.l.b16 %v1724
    %v1762 = vunpack.c.l.b16 %v1725
    %v1763 = vunpack.c.l.b16 %v1726
    %v1764 = vunpack.c.l.b16 %v1727
    %v1765 = vunpack.c.l.b16 %v1728
    %v1766 = vunpack.c.l.b16 %v1729
    %v1767 = vunpack.c.l.b16 %v1730
    %v1768 = vpack.c.b16 %v1753, %v1752
    %v1769 = vpack.c.b16 %v1755, %v1754
    %v1770 = vpack.c.b16 %v1757, %v1756
    %v1771 = vpack.c.b16 %v1759, %v1758
    %v1772 = vpack.c.b16 %v1761, %v1760
    %v1773 = vpack.c.b16 %v1763, %v1762
    %v1774 = vpack.c.b16 %v1765, %v1764
    %v1775 = vpack.c.b16 %v1767, %v1766
    %1784 = vmatprep.subr.bf16.mxu0 0
    %1785 = vmatpush1.bf16.msra.mxu0 %v1775
    %1786 = vmatprep.subr.bf16.mxu0 0
    %1787 = vmatpush1.bf16.msra.mxu0 %v1774
    %1788 = vmatprep.subr.bf16.mxu0 0
    %1789 = vmatpush1.bf16.msra.mxu0 %v1773
    %1790 = vmatprep.subr.bf16.mxu0 0
    %1791 = vmatpush1.bf16.msra.mxu0 %v1772
    %1792 = vmatprep.subr.bf16.mxu0 0
    %1793 = vmatpush1.bf16.msra.mxu0 %v1771
    %1794 = vmatprep.subr.bf16.mxu0 0
    %1795 = vmatpush1.bf16.msra.mxu0 %v1770
    %1796 = vmatprep.subr.bf16.mxu0 0
    %1797 = vmatpush1.bf16.msra.mxu0 %v1769
    %1798 = vmatprep.subr.bf16.mxu0 0
    %1799 = vmatpush1.bf16.msra.mxu0 %v1768
    %1800 = vmatprep.subr.bf16.mxu0 0
    %1801 = vmatpush2.bf16.msra.mxu0 0
    %1802 = vmatprep.subr.bf16.mxu0 0
    %1803 = vmatpush2.bf16.msra.mxu0 0
    %1804 = vmatprep.subr.bf16.mxu0 0
    %1805 = vmatpush2.bf16.msra.mxu0 0
    %1806 = vmatprep.subr.bf16.mxu0 0
    %1807 = vmatpush2.bf16.msra.mxu0 0
    %1808 = vmatprep.subr.bf16.mxu0 0
    %1809 = vmatpush2.bf16.msra.mxu0 0
    %1810 = vmatprep.subr.bf16.mxu0 0
    %1811 = vmatpush2.bf16.msra.mxu0 0
    %1812 = vmatprep.subr.bf16.mxu0 0
    %1813 = vmatpush2.bf16.msra.mxu0 0
    %1814 = vmatprep.subr.bf16.mxu0 0
    %1815 = vmatpush2.bf16.msra.mxu0 0
    %1816 = vmatprep.mubr.bf16.mxu0 0
    %1817 = vmatmul.mubr.bf16.gmra.mxu0 %v1698
    %v1818 = vpop.f32.mrf.mxu0
    %v1819 = vadd.f32 %v1735, %v1818
    %v1820 = vpop.f32.mrf.mxu0
    %v1821 = vpop.f32.mrf.mxu0
    %v1822 = vadd.f32 %v1735, %v1821
    %v1823 = vpop.f32.mrf.mxu0
    %1824 = vmatprep.mubr.bf16.mxu0 0
    %1825 = vmatmul.mubr.bf16.gmra.mxu0 %v1699
    %v1826 = vpop.f32.mrf.mxu0
    %v1827 = vadd.f32 %v1735, %v1826
    %v1828 = vpop.f32.mrf.mxu0
    %v1829 = vpop.f32.mrf.mxu0
    %v1830 = vadd.f32 %v1735, %v1829
    %v1831 = vpop.f32.mrf.mxu0
    %1832 = vmatprep.mubr.bf16.mxu0 0
    %1833 = vmatmul.mubr.bf16.gmra.mxu0 %v1700
    %v1834 = vpop.f32.mrf.mxu0
    %v1835 = vadd.f32 %v1735, %v1834
    %v1836 = vpop.f32.mrf.mxu0
    %v1837 = vpop.f32.mrf.mxu0
    %v1838 = vadd.f32 %v1735, %v1837
    %v1839 = vpop.f32.mrf.mxu0
    %1840 = vmatprep.mubr.bf16.mxu0 0
    %1841 = vmatmul.mubr.bf16.gmra.mxu0 %v1701
    %v1842 = vpop.f32.mrf.mxu0
    %v1843 = vadd.f32 %v1735, %v1842
    %v1844 = vpop.f32.mrf.mxu0
    %v1845 = vpop.f32.mrf.mxu0
    %v1846 = vadd.f32 %v1735, %v1845
    %v1847 = vpop.f32.mrf.mxu0
    %1848 = vmatprep.mubr.bf16.mxu0 0
    %1849 = vmatmul.mubr.bf16.gmra.mxu0 %v1702
    %v1850 = vpop.f32.mrf.mxu0
    %v1851 = vadd.f32 %v1735, %v1850
    %v1852 = vpop.f32.mrf.mxu0
    %v1853 = vpop.f32.mrf.mxu0
    %v1854 = vadd.f32 %v1735, %v1853
    %v1855 = vpop.f32.mrf.mxu0
    %1856 = vmatprep.mubr.bf16.mxu0 0
    %1857 = vmatmul.mubr.bf16.gmra.mxu0 %v1703
    %v1858 = vpop.f32.mrf.mxu0
    %v1859 = vadd.f32 %v1735, %v1858
    %v1860 = vpop.f32.mrf.mxu0
    %v1861 = vpop.f32.mrf.mxu0
    %v1862 = vadd.f32 %v1735, %v1861
    %v1863 = vpop.f32.mrf.mxu0
    %1864 = vmatprep.mubr.bf16.mxu0 0
    %1865 = vmatmul.mubr.bf16.gmra.mxu0 %v1704
    %v1866 = vpop.f32.mrf.mxu0
    %v1867 = vadd.f32 %v1735, %v1866
    %v1868 = vpop.f32.mrf.mxu0
    %v1869 = vpop.f32.mrf.mxu0
    %v1870 = vadd.f32 %v1735, %v1869
    %v1871 = vpop.f32.mrf.mxu0
    %1872 = vmatprep.mubr.bf16.mxu0 0
    %1873 = vmatmul.mubr.bf16.gmra.mxu0 %v1705
    %v1874 = vpop.f32.mrf.mxu0
    %v1875 = vadd.f32 %v1735, %v1874
    %v1876 = vpop.f32.mrf.mxu0
    %v1877 = vpop.f32.mrf.mxu0
    %v1878 = vadd.f32 %v1735, %v1877
    %v1879 = vpop.f32.mrf.mxu0
    %1880 = vmatprep.mubr.bf16.mxu0 0
    %1881 = vmatmul.mubr.bf16.gmra.mxu0 %v1706
    %v1882 = vpop.f32.mrf.mxu0
    %v1883 = vadd.f32 %v1735, %v1882
    %v1884 = vpop.f32.mrf.mxu0
    %v1885 = vpop.f32.mrf.mxu0
    %v1886 = vadd.f32 %v1735, %v1885
    %v1887 = vpop.f32.mrf.mxu0
    %1888 = vmatprep.mubr.bf16.mxu0 0
    %1889 = vmatmul.mubr.bf16.gmra.mxu0 %v1707
    %v1890 = vpop.f32.mrf.mxu0
    %v1891 = vadd.f32 %v1735, %v1890
    %v1892 = vpop.f32.mrf.mxu0
    %v1893 = vpop.f32.mrf.mxu0
    %v1894 = vadd.f32 %v1735, %v1893
    %v1895 = vpop.f32.mrf.mxu0
    %1896 = vmatprep.mubr.bf16.mxu0 0
    %1897 = vmatmul.mubr.bf16.gmra.mxu0 %v1708
    %v1898 = vpop.f32.mrf.mxu0
    %v1899 = vadd.f32 %v1735, %v1898
    %v1900 = vpop.f32.mrf.mxu0
    %v1901 = vpop.f32.mrf.mxu0
    %v1902 = vadd.f32 %v1735, %v1901
    %v1903 = vpop.f32.mrf.mxu0
    %1904 = vmatprep.mubr.bf16.mxu0 0
    %1905 = vmatmul.mubr.bf16.gmra.mxu0 %v1709
    %v1906 = vpop.f32.mrf.mxu0
    %v1907 = vadd.f32 %v1735, %v1906
    %v1908 = vpop.f32.mrf.mxu0
    %v1909 = vpop.f32.mrf.mxu0
    %v1910 = vadd.f32 %v1735, %v1909
    %v1911 = vpop.f32.mrf.mxu0
    %1912 = vmatprep.mubr.bf16.mxu0 0
    %1913 = vmatmul.mubr.bf16.gmra.mxu0 %v1710
    %v1914 = vpop.f32.mrf.mxu0
    %v1915 = vadd.f32 %v1735, %v1914
    %v1916 = vpop.f32.mrf.mxu0
    %v1917 = vpop.f32.mrf.mxu0
    %v1918 = vadd.f32 %v1735, %v1917
    %v1919 = vpop.f32.mrf.mxu0
    %1920 = vmatprep.mubr.bf16.mxu0 0
    %1921 = vmatmul.mubr.bf16.gmra.mxu0 %v1711
    %v1922 = vpop.f32.mrf.mxu0
    %v1923 = vadd.f32 %v1735, %v1922
    %v1924 = vpop.f32.mrf.mxu0
    %v1925 = vpop.f32.mrf.mxu0
    %v1926 = vadd.f32 %v1735, %v1925
    %v1927 = vpop.f32.mrf.mxu0
    %1928 = vmatprep.mubr.bf16.mxu0 0
    %1929 = vmatmul.mubr.bf16.gmra.mxu0 %v1712
    %v1930 = vpop.f32.mrf.mxu0
    %v1931 = vadd.f32 %v1735, %v1930
    %v1932 = vpop.f32.mrf.mxu0
    %v1933 = vpop.f32.mrf.mxu0
    %v1934 = vadd.f32 %v1735, %v1933
    %v1935 = vpop.f32.mrf.mxu0
    %1936 = vmatprep.mubr.bf16.mxu0 0
    %1937 = vmatmul.mubr.bf16.gmra.mxu0 %v1713
    %v1938 = vpop.f32.mrf.mxu0
    %v1939 = vadd.f32 %v1735, %v1938
    %v1940 = vpop.f32.mrf.mxu0
    %v1941 = vpop.f32.mrf.mxu0
    %v1942 = vadd.f32 %v1735, %v1941
    %v1943 = vpop.f32.mrf.mxu0
    %1944 = vdwg.mxu0
    %v1945 = vadd.f32 %v1819, %v1822
    %v1946 = vadd.f32 %v1945, %v1827
    %v1947 = vadd.f32 %v1946, %v1830
    %v1948 = vadd.f32 %v1947, %v1835
    %v1949 = vadd.f32 %v1948, %v1838
    %v1950 = vadd.f32 %v1949, %v1843
    %v1951 = vadd.f32 %v1950, %v1846
    %v1952 = vadd.f32 %v1951, %v1851
    %v1953 = vadd.f32 %v1952, %v1854
    %v1954 = vadd.f32 %v1953, %v1859
    %v1955 = vadd.f32 %v1954, %v1862
    %v1956 = vadd.f32 %v1955, %v1867
    %v1957 = vadd.f32 %v1956, %v1870
    %v1958 = vadd.f32 %v1957, %v1875
    %v1959 = vadd.f32 %v1958, %v1878
    %v1960 = vadd.f32 %v1959, %v1883
    %v1961 = vadd.f32 %v1960, %v1886
    %v1962 = vadd.f32 %v1961, %v1891
    %v1963 = vadd.f32 %v1962, %v1894
    %v1964 = vadd.f32 %v1963, %v1899
    %v1965 = vadd.f32 %v1964, %v1902
    %v1966 = vadd.f32 %v1965, %v1907
    %v1967 = vadd.f32 %v1966, %v1910
    %v1968 = vadd.f32 %v1967, %v1915
    %v1969 = vadd.f32 %v1968, %v1918
    %v1970 = vadd.f32 %v1969, %v1923
    %v1971 = vadd.f32 %v1970, %v1926
    %v1972 = vadd.f32 %v1971, %v1931
    %v1973 = vadd.f32 %v1972, %v1934
    %v1974 = vadd.f32 %v1973, %v1939
    %v1975 = vadd.f32 %v1974, %v1942
    %v1976 = vrot.slane %v1975, 4
    %v1977 = vadd.f32 %v1975, %v1976
    %v1978 = vrot.slane %v1977, 2
    %v1979 = vadd.f32 %v1977, %v1978
    %v1980 = vrot.slane %v1979, 1
    %v1981 = vadd.f32 %v1979, %v1980
    %v1982 = vmul.f32 %v1981, 0.00390625
    %v1983 = vmul.f32 %v1819, %v1819
    %v1984 = vmul.f32 %v1822, %v1822
    %v1985 = vmul.f32 %v1827, %v1827
    %v1986 = vmul.f32 %v1830, %v1830
    %v1987 = vmul.f32 %v1835, %v1835
    %v1988 = vmul.f32 %v1838, %v1838
    %v1989 = vmul.f32 %v1843, %v1843
    %v1990 = vmul.f32 %v1846, %v1846
    %v1991 = vmul.f32 %v1851, %v1851
    %v1992 = vmul.f32 %v1854, %v1854
    %v1993 = vmul.f32 %v1859, %v1859
    %v1994 = vmul.f32 %v1862, %v1862
    %v1995 = vmul.f32 %v1867, %v1867
    %v1996 = vmul.f32 %v1870, %v1870
    %v1997 = vmul.f32 %v1875, %v1875
    %v1998 = vmul.f32 %v1878, %v1878
    %v1999 = vmul.f32 %v1883, %v1883
    %v2000 = vmul.f32 %v1886, %v1886
    %v2001 = vmul.f32 %v1891, %v1891
    %v2002 = vmul.f32 %v1894, %v1894
    %v2003 = vmul.f32 %v1899, %v1899
    %v2004 = vmul.f32 %v1902, %v1902
    %v2005 = vmul.f32 %v1907, %v1907
    %v2006 = vmul.f32 %v1910, %v1910
    %v2007 = vmul.f32 %v1915, %v1915
    %v2008 = vmul.f32 %v1918, %v1918
    %v2009 = vmul.f32 %v1923, %v1923
    %v2010 = vmul.f32 %v1926, %v1926
    %v2011 = vmul.f32 %v1931, %v1931
    %v2012 = vmul.f32 %v1934, %v1934
    %v2013 = vmul.f32 %v1939, %v1939
    %v2014 = vmul.f32 %v1942, %v1942
    %v2015 = vadd.f32 %v1983, %v1984
    %v2016 = vadd.f32 %v2015, %v1985
    %v2017 = vadd.f32 %v2016, %v1986
    %v2018 = vadd.f32 %v2017, %v1987
    %v2019 = vadd.f32 %v2018, %v1988
    %v2020 = vadd.f32 %v2019, %v1989
    %v2021 = vadd.f32 %v2020, %v1990
    %v2022 = vadd.f32 %v2021, %v1991
    %v2023 = vadd.f32 %v2022, %v1992
    %v2024 = vadd.f32 %v2023, %v1993
    %v2025 = vadd.f32 %v2024, %v1994
    %v2026 = vadd.f32 %v2025, %v1995
    %v2027 = vadd.f32 %v2026, %v1996
    %v2028 = vadd.f32 %v2027, %v1997
    %v2029 = vadd.f32 %v2028, %v1998
    %v2030 = vadd.f32 %v2029, %v1999
    %v2031 = vadd.f32 %v2030, %v2000
    %v2032 = vadd.f32 %v2031, %v2001
    %v2033 = vadd.f32 %v2032, %v2002
    %v2034 = vadd.f32 %v2033, %v2003
    %v2035 = vadd.f32 %v2034, %v2004
    %v2036 = vadd.f32 %v2035, %v2005
    %v2037 = vadd.f32 %v2036, %v2006
    %v2038 = vadd.f32 %v2037, %v2007
    %v2039 = vadd.f32 %v2038, %v2008
    %v2040 = vadd.f32 %v2039, %v2009
    %v2041 = vadd.f32 %v2040, %v2010
    %v2042 = vadd.f32 %v2041, %v2011
    %v2043 = vadd.f32 %v2042, %v2012
    %v2044 = vadd.f32 %v2043, %v2013
    %v2045 = vadd.f32 %v2044, %v2014
    %v2046 = vrot.slane %v2045, 4
    %v2047 = vadd.f32 %v2045, %v2046
    %v2048 = vrot.slane %v2047, 2
    %v2049 = vadd.f32 %v2047, %v2048
    %v2050 = vrot.slane %v2049, 1
    %v2051 = vadd.f32 %v2049, %v2050
    %v2052 = vmul.f32 %v2051, 0.00390625
    %v2053 = vmul.f32 %v1982, %v1982
    %v2054 = vsub.f32 %v2052, %v2053
    %v2055 = vadd.f32 %v2054, 1e-05
    %v2056 = vrsqrt.pop %v2055
    %v2057 = vld [vmem:[%s3 + $0x3] sm:$0x1]
    %v2058 = vmul.f32 %v2056, %v2057
    %v2059 = vsub.f32 %v1819, %v1982
    %v2060 = vsub.f32 %v1822, %v1982
    %v2061 = vsub.f32 %v1827, %v1982
    %v2062 = vsub.f32 %v1830, %v1982
    %v2063 = vsub.f32 %v1835, %v1982
    %v2064 = vsub.f32 %v1838, %v1982
    %v2065 = vsub.f32 %v1843, %v1982
    %v2066 = vsub.f32 %v1846, %v1982
    %v2067 = vsub.f32 %v1851, %v1982
    %v2068 = vsub.f32 %v1854, %v1982
    %v2069 = vsub.f32 %v1859, %v1982
    %v2070 = vsub.f32 %v1862, %v1982
    %v2071 = vsub.f32 %v1867, %v1982
    %v2072 = vsub.f32 %v1870, %v1982
    %v2073 = vsub.f32 %v1875, %v1982
    %v2074 = vsub.f32 %v1878, %v1982
    %v2075 = vsub.f32 %v1883, %v1982
    %v2076 = vsub.f32 %v1886, %v1982
    %v2077 = vsub.f32 %v1891, %v1982
    %v2078 = vsub.f32 %v1894, %v1982
    %v2079 = vsub.f32 %v1899, %v1982
    %v2080 = vsub.f32 %v1902, %v1982
    %v2081 = vsub.f32 %v1907, %v1982
    %v2082 = vsub.f32 %v1910, %v1982
    %v2083 = vsub.f32 %v1915, %v1982
    %v2084 = vsub.f32 %v1918, %v1982
    %v2085 = vsub.f32 %v1923, %v1982
    %v2086 = vsub.f32 %v1926, %v1982
    %v2087 = vsub.f32 %v1931, %v1982
    %v2088 = vsub.f32 %v1934, %v1982
    %v2089 = vsub.f32 %v1939, %v1982
    %v2090 = vsub.f32 %v1942, %v1982
    %v2091 = vlaneseq
    %v2092 = vshrl.u32 %v2091, 7
    %v2093 = vsub.s32 0, %v2092
    %v2094 = vrot.slane %v2058, %v2093
    %v2095 = vmul.f32 %v2059, %v2094
    %v2096 = vmul.f32 %v2060, %v2094
    %v2097 = vmul.f32 %v2061, %v2094
    %v2098 = vmul.f32 %v2062, %v2094
    %v2099 = vmul.f32 %v2063, %v2094
    %v2100 = vmul.f32 %v2064, %v2094
    %v2101 = vmul.f32 %v2065, %v2094
    %v2102 = vmul.f32 %v2066, %v2094
    %v2103 = vmul.f32 %v2067, %v2094
    %v2104 = vmul.f32 %v2068, %v2094
    %v2105 = vmul.f32 %v2069, %v2094
    %v2106 = vmul.f32 %v2070, %v2094
    %v2107 = vmul.f32 %v2071, %v2094
    %v2108 = vmul.f32 %v2072, %v2094
    %v2109 = vmul.f32 %v2073, %v2094
    %v2110 = vmul.f32 %v2074, %v2094
    %v2111 = vmul.f32 %v2075, %v2094
    %v2112 = vmul.f32 %v2076, %v2094
    %v2113 = vmul.f32 %v2077, %v2094
    %v2114 = vmul.f32 %v2078, %v2094
    %v2115 = vmul.f32 %v2079, %v2094
    %v2116 = vmul.f32 %v2080, %v2094
    %v2117 = vmul.f32 %v2081, %v2094
    %v2118 = vmul.f32 %v2082, %v2094
    %v2119 = vmul.f32 %v2083, %v2094
    %v2120 = vmul.f32 %v2084, %v2094
    %v2121 = vmul.f32 %v2085, %v2094
    %v2122 = vmul.f32 %v2086, %v2094
    %v2123 = vmul.f32 %v2087, %v2094
    %v2124 = vmul.f32 %v2088, %v2094
    %v2125 = vmul.f32 %v2089, %v2094
    %v2126 = vmul.f32 %v2090, %v2094
    %v2127 = vld [vmem:[%s4 + $0x3] sm:$0x1]
    %v2128 = vlaneseq
    %v2129 = vshrl.u32 %v2128, 7
    %v2130 = vsub.s32 0, %v2129
    %v2131 = vrot.slane %v2127, %v2130
    %v2132 = vadd.f32 %v2095, %v2131
    %v2133 = vadd.f32 %v2096, %v2131
    %v2134 = vadd.f32 %v2097, %v2131
    %v2135 = vadd.f32 %v2098, %v2131
    %v2136 = vadd.f32 %v2099, %v2131
    %v2137 = vadd.f32 %v2100, %v2131
    %v2138 = vadd.f32 %v2101, %v2131
    %v2139 = vadd.f32 %v2102, %v2131
    %v2140 = vadd.f32 %v2103, %v2131
    %v2141 = vadd.f32 %v2104, %v2131
    %v2142 = vadd.f32 %v2105, %v2131
    %v2143 = vadd.f32 %v2106, %v2131
    %v2144 = vadd.f32 %v2107, %v2131
    %v2145 = vadd.f32 %v2108, %v2131
    %v2146 = vadd.f32 %v2109, %v2131
    %v2147 = vadd.f32 %v2110, %v2131
    %v2148 = vadd.f32 %v2111, %v2131
    %v2149 = vadd.f32 %v2112, %v2131
    %v2150 = vadd.f32 %v2113, %v2131
    %v2151 = vadd.f32 %v2114, %v2131
    %v2152 = vadd.f32 %v2115, %v2131
    %v2153 = vadd.f32 %v2116, %v2131
    %v2154 = vadd.f32 %v2117, %v2131
    %v2155 = vadd.f32 %v2118, %v2131
    %v2156 = vadd.f32 %v2119, %v2131
    %v2157 = vadd.f32 %v2120, %v2131
    %v2158 = vadd.f32 %v2121, %v2131
    %v2159 = vadd.f32 %v2122, %v2131
    %v2160 = vadd.f32 %v2123, %v2131
    %v2161 = vadd.f32 %v2124, %v2131
    %v2162 = vadd.f32 %v2125, %v2131
    %v2163 = vadd.f32 %v2126, %v2131
    %v2164 = vmax.f32 %v2132, 0.0
    %v2165 = vmax.f32 %v2133, 0.0
    %v2166 = vmax.f32 %v2134, 0.0
    %v2167 = vmax.f32 %v2135, 0.0
    %v2168 = vmax.f32 %v2136, 0.0
    %v2169 = vmax.f32 %v2137, 0.0
    %v2170 = vmax.f32 %v2138, 0.0
    %v2171 = vmax.f32 %v2139, 0.0
    %v2172 = vmax.f32 %v2140, 0.0
    %v2173 = vmax.f32 %v2141, 0.0
    %v2174 = vmax.f32 %v2142, 0.0
    %v2175 = vmax.f32 %v2143, 0.0
    %v2176 = vmax.f32 %v2144, 0.0
    %v2177 = vmax.f32 %v2145, 0.0
    %v2178 = vmax.f32 %v2146, 0.0
    %v2179 = vmax.f32 %v2147, 0.0
    %v2180 = vmax.f32 %v2148, 0.0
    %v2181 = vmax.f32 %v2149, 0.0
    %v2182 = vmax.f32 %v2150, 0.0
    %v2183 = vmax.f32 %v2151, 0.0
    %v2184 = vmax.f32 %v2152, 0.0
    %v2185 = vmax.f32 %v2153, 0.0
    %v2186 = vmax.f32 %v2154, 0.0
    %v2187 = vmax.f32 %v2155, 0.0
    %v2188 = vmax.f32 %v2156, 0.0
    %v2189 = vmax.f32 %v2157, 0.0
    %v2190 = vmax.f32 %v2158, 0.0
    %v2191 = vmax.f32 %v2159, 0.0
    %v2192 = vmax.f32 %v2160, 0.0
    %v2193 = vmax.f32 %v2161, 0.0
    %v2194 = vmax.f32 %v2162, 0.0
    %v2195 = vmax.f32 %v2163, 0.0
    %v2196 = vpack.c.bf16 %v2165, %v2164
    %v2197 = vpack.c.bf16 %v2167, %v2166
    %v2198 = vpack.c.bf16 %v2169, %v2168
    %v2199 = vpack.c.bf16 %v2171, %v2170
    %v2200 = vpack.c.bf16 %v2173, %v2172
    %v2201 = vpack.c.bf16 %v2175, %v2174
    %v2202 = vpack.c.bf16 %v2177, %v2176
    %v2203 = vpack.c.bf16 %v2179, %v2178
    %v2204 = vpack.c.bf16 %v2181, %v2180
    %v2205 = vpack.c.bf16 %v2183, %v2182
    %v2206 = vpack.c.bf16 %v2185, %v2184
    %v2207 = vpack.c.bf16 %v2187, %v2186
    %v2208 = vpack.c.bf16 %v2189, %v2188
    %v2209 = vpack.c.bf16 %v2191, %v2190
    %v2210 = vpack.c.bf16 %v2193, %v2192
    %v2211 = vpack.c.bf16 %v2195, %v2194
    %s2212 = scalar_lea.vmem %s5, 192
    %v2213 = vld [vmem:[%s2212] sm:$0xf]
    %v2214 = vld [vmem:[%s2212 + $0x4] sm:$0xf]
    %v2215 = vld [vmem:[%s2212 + $0x8] sm:$0xf]
    %v2216 = vld [vmem:[%s2212 + $0xc] sm:$0xf]
    %v2217 = vld [vmem:[%s2212 + $0x10] sm:$0xf]
    %v2218 = vld [vmem:[%s2212 + $0x14] sm:$0xf]
    %v2219 = vld [vmem:[%s2212 + $0x18] sm:$0xf]
    %v2220 = vld [vmem:[%s2212 + $0x1c] sm:$0xf]
    %v2221 = vld [vmem:[%s2212 + $0x20] sm:$0xf]
    %v2222 = vld [vmem:[%s2212 + $0x24] sm:$0xf]
    %v2223 = vld [vmem:[%s2212 + $0x28] sm:$0xf]
    %v2224 = vld [vmem:[%s2212 + $0x2c] sm:$0xf]
    %v2225 = vld [vmem:[%s2212 + $0x30] sm:$0xf]
    %v2226 = vld [vmem:[%s2212 + $0x34] sm:$0xf]
    %v2227 = vld [vmem:[%s2212 + $0x38] sm:$0xf]
    %v2228 = vld [vmem:[%s2212 + $0x3c] sm:$0xf]
    %v2229 = vld [vmem:[%s6 + $0x3] sm:$0x1]
    %v2230 = vlaneseq
    %v2231 = vshrl.u32 %v2230, 7
    %v2232 = vsub.s32 0, %v2231
    %v2233 = vrot.slane %v2229, %v2232
    %v2250 = vunpack.c.l.b16 %v2213
    %v2251 = vunpack.c.l.b16 %v2214
    %v2252 = vunpack.c.l.b16 %v2215
    %v2253 = vunpack.c.l.b16 %v2216
    %v2254 = vunpack.c.l.b16 %v2217
    %v2255 = vunpack.c.l.b16 %v2218
    %v2256 = vunpack.c.l.b16 %v2219
    %v2257 = vunpack.c.l.b16 %v2220
    %v2258 = vunpack.c.l.b16 %v2221
    %v2259 = vunpack.c.l.b16 %v2222
    %v2260 = vunpack.c.l.b16 %v2223
    %v2261 = vunpack.c.l.b16 %v2224
    %v2262 = vunpack.c.l.b16 %v2225
    %v2263 = vunpack.c.l.b16 %v2226
    %v2264 = vunpack.c.l.b16 %v2227
    %v2265 = vunpack.c.l.b16 %v2228
    %v2266 = vpack.c.b16 %v2251, %v2250
    %v2267 = vpack.c.b16 %v2253, %v2252
    %v2268 = vpack.c.b16 %v2255, %v2254
    %v2269 = vpack.c.b16 %v2257, %v2256
    %v2270 = vpack.c.b16 %v2259, %v2258
    %v2271 = vpack.c.b16 %v2261, %v2260
    %v2272 = vpack.c.b16 %v2263, %v2262
    %v2273 = vpack.c.b16 %v2265, %v2264
    %2282 = vmatprep.subr.bf16.mxu0 0
    %2283 = vmatpush1.bf16.msra.mxu0 %v2273
    %2284 = vmatprep.subr.bf16.mxu0 0
    %2285 = vmatpush1.bf16.msra.mxu0 %v2272
    %2286 = vmatprep.subr.bf16.mxu0 0
    %2287 = vmatpush1.bf16.msra.mxu0 %v2271
    %2288 = vmatprep.subr.bf16.mxu0 0
    %2289 = vmatpush1.bf16.msra.mxu0 %v2270
    %2290 = vmatprep.subr.bf16.mxu0 0
    %2291 = vmatpush1.bf16.msra.mxu0 %v2269
    %2292 = vmatprep.subr.bf16.mxu0 0
    %2293 = vmatpush1.bf16.msra.mxu0 %v2268
    %2294 = vmatprep.subr.bf16.mxu0 0
    %2295 = vmatpush1.bf16.msra.mxu0 %v2267
    %2296 = vmatprep.subr.bf16.mxu0 0
    %2297 = vmatpush1.bf16.msra.mxu0 %v2266
    %2298 = vmatprep.subr.bf16.mxu0 0
    %2299 = vmatpush2.bf16.msra.mxu0 0
    %2300 = vmatprep.subr.bf16.mxu0 0
    %2301 = vmatpush2.bf16.msra.mxu0 0
    %2302 = vmatprep.subr.bf16.mxu0 0
    %2303 = vmatpush2.bf16.msra.mxu0 0
    %2304 = vmatprep.subr.bf16.mxu0 0
    %2305 = vmatpush2.bf16.msra.mxu0 0
    %2306 = vmatprep.subr.bf16.mxu0 0
    %2307 = vmatpush2.bf16.msra.mxu0 0
    %2308 = vmatprep.subr.bf16.mxu0 0
    %2309 = vmatpush2.bf16.msra.mxu0 0
    %2310 = vmatprep.subr.bf16.mxu0 0
    %2311 = vmatpush2.bf16.msra.mxu0 0
    %2312 = vmatprep.subr.bf16.mxu0 0
    %2313 = vmatpush2.bf16.msra.mxu0 0
    %2314 = vmatprep.mubr.bf16.mxu0 0
    %2315 = vmatmul.mubr.bf16.gmra.mxu0 %v2196
    %v2316 = vpop.f32.mrf.mxu0
    %v2317 = vadd.f32 %v2233, %v2316
    %v2318 = vpop.f32.mrf.mxu0
    %v2319 = vpop.f32.mrf.mxu0
    %v2320 = vadd.f32 %v2233, %v2319
    %v2321 = vpop.f32.mrf.mxu0
    %2322 = vmatprep.mubr.bf16.mxu0 0
    %2323 = vmatmul.mubr.bf16.gmra.mxu0 %v2197
    %v2324 = vpop.f32.mrf.mxu0
    %v2325 = vadd.f32 %v2233, %v2324
    %v2326 = vpop.f32.mrf.mxu0
    %v2327 = vpop.f32.mrf.mxu0
    %v2328 = vadd.f32 %v2233, %v2327
    %v2329 = vpop.f32.mrf.mxu0
    %2330 = vmatprep.mubr.bf16.mxu0 0
    %2331 = vmatmul.mubr.bf16.gmra.mxu0 %v2198
    %v2332 = vpop.f32.mrf.mxu0
    %v2333 = vadd.f32 %v2233, %v2332
    %v2334 = vpop.f32.mrf.mxu0
    %v2335 = vpop.f32.mrf.mxu0
    %v2336 = vadd.f32 %v2233, %v2335
    %v2337 = vpop.f32.mrf.mxu0
    %2338 = vmatprep.mubr.bf16.mxu0 0
    %2339 = vmatmul.mubr.bf16.gmra.mxu0 %v2199
    %v2340 = vpop.f32.mrf.mxu0
    %v2341 = vadd.f32 %v2233, %v2340
    %v2342 = vpop.f32.mrf.mxu0
    %v2343 = vpop.f32.mrf.mxu0
    %v2344 = vadd.f32 %v2233, %v2343
    %v2345 = vpop.f32.mrf.mxu0
    %2346 = vmatprep.mubr.bf16.mxu0 0
    %2347 = vmatmul.mubr.bf16.gmra.mxu0 %v2200
    %v2348 = vpop.f32.mrf.mxu0
    %v2349 = vadd.f32 %v2233, %v2348
    %v2350 = vpop.f32.mrf.mxu0
    %v2351 = vpop.f32.mrf.mxu0
    %v2352 = vadd.f32 %v2233, %v2351
    %v2353 = vpop.f32.mrf.mxu0
    %2354 = vmatprep.mubr.bf16.mxu0 0
    %2355 = vmatmul.mubr.bf16.gmra.mxu0 %v2201
    %v2356 = vpop.f32.mrf.mxu0
    %v2357 = vadd.f32 %v2233, %v2356
    %v2358 = vpop.f32.mrf.mxu0
    %v2359 = vpop.f32.mrf.mxu0
    %v2360 = vadd.f32 %v2233, %v2359
    %v2361 = vpop.f32.mrf.mxu0
    %2362 = vmatprep.mubr.bf16.mxu0 0
    %2363 = vmatmul.mubr.bf16.gmra.mxu0 %v2202
    %v2364 = vpop.f32.mrf.mxu0
    %v2365 = vadd.f32 %v2233, %v2364
    %v2366 = vpop.f32.mrf.mxu0
    %v2367 = vpop.f32.mrf.mxu0
    %v2368 = vadd.f32 %v2233, %v2367
    %v2369 = vpop.f32.mrf.mxu0
    %2370 = vmatprep.mubr.bf16.mxu0 0
    %2371 = vmatmul.mubr.bf16.gmra.mxu0 %v2203
    %v2372 = vpop.f32.mrf.mxu0
    %v2373 = vadd.f32 %v2233, %v2372
    %v2374 = vpop.f32.mrf.mxu0
    %v2375 = vpop.f32.mrf.mxu0
    %v2376 = vadd.f32 %v2233, %v2375
    %v2377 = vpop.f32.mrf.mxu0
    %2378 = vmatprep.mubr.bf16.mxu0 0
    %2379 = vmatmul.mubr.bf16.gmra.mxu0 %v2204
    %v2380 = vpop.f32.mrf.mxu0
    %v2381 = vadd.f32 %v2233, %v2380
    %v2382 = vpop.f32.mrf.mxu0
    %v2383 = vpop.f32.mrf.mxu0
    %v2384 = vadd.f32 %v2233, %v2383
    %v2385 = vpop.f32.mrf.mxu0
    %2386 = vmatprep.mubr.bf16.mxu0 0
    %2387 = vmatmul.mubr.bf16.gmra.mxu0 %v2205
    %v2388 = vpop.f32.mrf.mxu0
    %v2389 = vadd.f32 %v2233, %v2388
    %v2390 = vpop.f32.mrf.mxu0
    %v2391 = vpop.f32.mrf.mxu0
    %v2392 = vadd.f32 %v2233, %v2391
    %v2393 = vpop.f32.mrf.mxu0
    %2394 = vmatprep.mubr.bf16.mxu0 0
    %2395 = vmatmul.mubr.bf16.gmra.mxu0 %v2206
    %v2396 = vpop.f32.mrf.mxu0
    %v2397 = vadd.f32 %v2233, %v2396
    %v2398 = vpop.f32.mrf.mxu0
    %v2399 = vpop.f32.mrf.mxu0
    %v2400 = vadd.f32 %v2233, %v2399
    %v2401 = vpop.f32.mrf.mxu0
    %2402 = vmatprep.mubr.bf16.mxu0 0
    %2403 = vmatmul.mubr.bf16.gmra.mxu0 %v2207
    %v2404 = vpop.f32.mrf.mxu0
    %v2405 = vadd.f32 %v2233, %v2404
    %v2406 = vpop.f32.mrf.mxu0
    %v2407 = vpop.f32.mrf.mxu0
    %v2408 = vadd.f32 %v2233, %v2407
    %v2409 = vpop.f32.mrf.mxu0
    %2410 = vmatprep.mubr.bf16.mxu0 0
    %2411 = vmatmul.mubr.bf16.gmra.mxu0 %v2208
    %v2412 = vpop.f32.mrf.mxu0
    %v2413 = vadd.f32 %v2233, %v2412
    %v2414 = vpop.f32.mrf.mxu0
    %v2415 = vpop.f32.mrf.mxu0
    %v2416 = vadd.f32 %v2233, %v2415
    %v2417 = vpop.f32.mrf.mxu0
    %2418 = vmatprep.mubr.bf16.mxu0 0
    %2419 = vmatmul.mubr.bf16.gmra.mxu0 %v2209
    %v2420 = vpop.f32.mrf.mxu0
    %v2421 = vadd.f32 %v2233, %v2420
    %v2422 = vpop.f32.mrf.mxu0
    %v2423 = vpop.f32.mrf.mxu0
    %v2424 = vadd.f32 %v2233, %v2423
    %v2425 = vpop.f32.mrf.mxu0
    %2426 = vmatprep.mubr.bf16.mxu0 0
    %2427 = vmatmul.mubr.bf16.gmra.mxu0 %v2210
    %v2428 = vpop.f32.mrf.mxu0
    %v2429 = vadd.f32 %v2233, %v2428
    %v2430 = vpop.f32.mrf.mxu0
    %v2431 = vpop.f32.mrf.mxu0
    %v2432 = vadd.f32 %v2233, %v2431
    %v2433 = vpop.f32.mrf.mxu0
    %2434 = vmatprep.mubr.bf16.mxu0 0
    %2435 = vmatmul.mubr.bf16.gmra.mxu0 %v2211
    %v2436 = vpop.f32.mrf.mxu0
    %v2437 = vadd.f32 %v2233, %v2436
    %v2438 = vpop.f32.mrf.mxu0
    %v2439 = vpop.f32.mrf.mxu0
    %v2440 = vadd.f32 %v2233, %v2439
    %v2441 = vpop.f32.mrf.mxu0
    %2442 = vdwg.mxu0
    %v2443 = vadd.f32 %v1415, %v2317
    %v2444 = vadd.f32 %v1416, %v2320
    %v2445 = vadd.f32 %v1417, %v2325
    %v2446 = vadd.f32 %v1418, %v2328
    %v2447 = vadd.f32 %v1419, %v2333
    %v2448 = vadd.f32 %v1420, %v2336
    %v2449 = vadd.f32 %v1421, %v2341
    %v2450 = vadd.f32 %v1422, %v2344
    %v2451 = vadd.f32 %v1423, %v2349
    %v2452 = vadd.f32 %v1424, %v2352
    %v2453 = vadd.f32 %v1425, %v2357
    %v2454 = vadd.f32 %v1426, %v2360
    %v2455 = vadd.f32 %v1427, %v2365
    %v2456 = vadd.f32 %v1428, %v2368
    %v2457 = vadd.f32 %v1429, %v2373
    %v2458 = vadd.f32 %v1430, %v2376
    %v2459 = vadd.f32 %v1431, %v2381
    %v2460 = vadd.f32 %v1432, %v2384
    %v2461 = vadd.f32 %v1433, %v2389
    %v2462 = vadd.f32 %v1434, %v2392
    %v2463 = vadd.f32 %v1435, %v2397
    %v2464 = vadd.f32 %v1436, %v2400
    %v2465 = vadd.f32 %v1437, %v2405
    %v2466 = vadd.f32 %v1438, %v2408
    %v2467 = vadd.f32 %v1439, %v2413
    %v2468 = vadd.f32 %v1440, %v2416
    %v2469 = vadd.f32 %v1441, %v2421
    %v2470 = vadd.f32 %v1442, %v2424
    %v2471 = vadd.f32 %v1443, %v2429
    %v2472 = vadd.f32 %v1444, %v2432
    %v2473 = vadd.f32 %v1445, %v2437
    %v2474 = vadd.f32 %v1446, %v2440
    %v2475 = vmul.f32 %v2443, 0.5
    %v2476 = vmul.f32 %v2444, 0.5
    %v2477 = vmul.f32 %v2445, 0.5
    %v2478 = vmul.f32 %v2446, 0.5
    %v2479 = vmul.f32 %v2447, 0.5
    %v2480 = vmul.f32 %v2448, 0.5
    %v2481 = vmul.f32 %v2449, 0.5
    %v2482 = vmul.f32 %v2450, 0.5
    %v2483 = vmul.f32 %v2451, 0.5
    %v2484 = vmul.f32 %v2452, 0.5
    %v2485 = vmul.f32 %v2453, 0.5
    %v2486 = vmul.f32 %v2454, 0.5
    %v2487 = vmul.f32 %v2455, 0.5
    %v2488 = vmul.f32 %v2456, 0.5
    %v2489 = vmul.f32 %v2457, 0.5
    %v2490 = vmul.f32 %v2458, 0.5
    %v2491 = vmul.f32 %v2459, 0.5
    %v2492 = vmul.f32 %v2460, 0.5
    %v2493 = vmul.f32 %v2461, 0.5
    %v2494 = vmul.f32 %v2462, 0.5
    %v2495 = vmul.f32 %v2463, 0.5
    %v2496 = vmul.f32 %v2464, 0.5
    %v2497 = vmul.f32 %v2465, 0.5
    %v2498 = vmul.f32 %v2466, 0.5
    %v2499 = vmul.f32 %v2467, 0.5
    %v2500 = vmul.f32 %v2468, 0.5
    %v2501 = vmul.f32 %v2469, 0.5
    %v2502 = vmul.f32 %v2470, 0.5
    %v2503 = vmul.f32 %v2471, 0.5
    %v2504 = vmul.f32 %v2472, 0.5
    %v2505 = vmul.f32 %v2473, 0.5
    %v2506 = vmul.f32 %v2474, 0.5
    %2507 = vst [vmem:[#allocation2] sm:$0xff] %v2475
    %2508 = vst [vmem:[#allocation2 + $0x8] sm:$0xff] %v2476
    %2509 = vst [vmem:[#allocation2 + $0x10] sm:$0xff] %v2477
    %2510 = vst [vmem:[#allocation2 + $0x18] sm:$0xff] %v2478
    %2511 = vst [vmem:[#allocation2 + $0x20] sm:$0xff] %v2479
    %2512 = vst [vmem:[#allocation2 + $0x28] sm:$0xff] %v2480
    %2513 = vst [vmem:[#allocation2 + $0x30] sm:$0xff] %v2481
    %2514 = vst [vmem:[#allocation2 + $0x38] sm:$0xff] %v2482
    %2515 = vst [vmem:[#allocation2 + $0x40] sm:$0xff] %v2483
    %2516 = vst [vmem:[#allocation2 + $0x48] sm:$0xff] %v2484
    %2517 = vst [vmem:[#allocation2 + $0x50] sm:$0xff] %v2485
    %2518 = vst [vmem:[#allocation2 + $0x58] sm:$0xff] %v2486
    %2519 = vst [vmem:[#allocation2 + $0x60] sm:$0xff] %v2487
    %2520 = vst [vmem:[#allocation2 + $0x68] sm:$0xff] %v2488
    %2521 = vst [vmem:[#allocation2 + $0x70] sm:$0xff] %v2489
    %2522 = vst [vmem:[#allocation2 + $0x78] sm:$0xff] %v2490
    %2523 = vst [vmem:[#allocation2 + $0x80] sm:$0xff] %v2491
    %2524 = vst [vmem:[#allocation2 + $0x88] sm:$0xff] %v2492
    %2525 = vst [vmem:[#allocation2 + $0x90] sm:$0xff] %v2493
    %2526 = vst [vmem:[#allocation2 + $0x98] sm:$0xff] %v2494
    %2527 = vst [vmem:[#allocation2 + $0xa0] sm:$0xff] %v2495
    %2528 = vst [vmem:[#allocation2 + $0xa8] sm:$0xff] %v2496
    %2529 = vst [vmem:[#allocation2 + $0xb0] sm:$0xff] %v2497
    %2530 = vst [vmem:[#allocation2 + $0xb8] sm:$0xff] %v2498
    %2531 = vst [vmem:[#allocation2 + $0xc0] sm:$0xff] %v2499
    %2532 = vst [vmem:[#allocation2 + $0xc8] sm:$0xff] %v2500
    %2533 = vst [vmem:[#allocation2 + $0xd0] sm:$0xff] %v2501
    %2534 = vst [vmem:[#allocation2 + $0xd8] sm:$0xff] %v2502
    %2535 = vst [vmem:[#allocation2 + $0xe0] sm:$0xff] %v2503
    %2536 = vst [vmem:[#allocation2 + $0xe8] sm:$0xff] %v2504
    %2537 = vst [vmem:[#allocation2 + $0xf0] sm:$0xff] %v2505
    %2538 = vst [vmem:[#allocation2 + $0xf8] sm:$0xff] %v2506
    // Predicated region
    $region30: #{resnet_forward.1} parent=1 // pred_check
      _
    $region31: #{resnet_forward.1} parent=1 // pred_check_branch
      %2540 = sbr.rel (0) target = $region33
    $region32: #{resnet_forward.1} parent=1 // pred_region
      %s2542 = ssub.s32 4096, 4096
      %2543 = vsyncadd [#allocation3], %s2542
      %s2544 = sshll.u32 [#allocation2], 4
      %s2545 = int_to_ptr.vmem [resolvable:$true] %s2544
      %2550 = dma.vmem_to_hbm [thread:$0]  %s2545, 4096, %s7, [#allocation3], 128, 128, 8
    $region33: #{resnet_forward.1} parent=1 // pred_fallthru
      _
    // Predicated region
    $region34: #{resnet_forward.1} parent=1 // pred_check
      _
    $region35: #{resnet_forward.1} parent=1 // pred_check_branch
      %2552 = sbr.rel (0) target = $region37
    $region36: #{resnet_forward.1} parent=1 // pred_region
      %2553 = dma.done [#allocation3], 4096
    $region37: #{resnet_forward.1} parent=1 // pred_fallthru
      _
    %2554 = vsyncpa [#allocation3], 1

</llo_original>
